<compile_context>
chip_gen: v6e
topology: v6e:2x2x1
jax: 0.10.0
libtpu: 0.0.40
codegen_flags: <defaults>
</compile_context>

<pallas_src>
import math

import jax
import jax.numpy as jnp
import numpy as np
from jax.experimental import pallas as pl
from jax.experimental.pallas import tpu as pltpu

# ---------------------------------------------------------------------------
# Exact (erf-based) GELU.  erf uses the float32 rational polynomial from
# XLA/Eigen (plain VPU ops); the divide is an EUP approximate reciprocal.
# ---------------------------------------------------------------------------
_ERF_ALPHA = (-2.72614225801306e-10, 2.77068142495902e-08, -2.10102402082508e-06,
              -5.69250639462346e-05, -7.34990630326855e-04, -2.95459980854025e-03,
              -1.60960333262415e-02)
_ERF_BETA = (-1.45660718464996e-05, -2.13374055278905e-04, -1.68282697438203e-03,
             -7.37332916720468e-03, -1.42647390514189e-02)


def _erf(x):
    x = jnp.clip(x, -4.0, 4.0)
    x2 = x * x
    p = jnp.full_like(x, _ERF_ALPHA[0])
    for a in _ERF_ALPHA[1:]:
        p = p * x2 + a
    q = jnp.full_like(x, _ERF_BETA[0])
    for b in _ERF_BETA[1:]:
        q = q * x2 + b
    # divide -> EUP approximate reciprocal (free slot; error suppressed by the
    # 1e-5 layer scale on the whole MLP branch).
    return x * p * pl.reciprocal(q, approx=True)


def _gelu(x):  # exact GELU: x * Phi(x)
    return 0.5 * x * (1.0 + _erf(x * 0.7071067811865475))


# ---------------------------------------------------------------------------
# Wrapper + kernel.  One grid step per batch image (>=2 parallel steps).
# ---------------------------------------------------------------------------
def ffn_forward(x_nchw, params):
    B, C, H, W = x_nchw.shape
    N = H * W
    hid = params["w1"].shape[0]
    # lane padding for the depthwise windows: 128-aligned and >= W + 1, so the
    # interior write stays lane-aligned and all 9 windows stay in-bounds.
    P = ((W + 1 + 127) // 128) * 128

    # NCHW -> (B, C, H*W) is a pure reshape: no wrapper transposes.
    x = x_nchw.reshape(B, C, N).astype(jnp.float32)

    # W-boundary masks for the depthwise taps, hoisted out of the kernel.
    w_id = jnp.arange(N, dtype=jnp.int32) % W
    mask_l = (w_id >= 1).astype(jnp.float32).reshape(1, N)       # reading w-1 valid
    mask_r = (w_id <= W - 2).astype(jnp.float32).reshape(1, N)   # reading w+1 valid

    def kernel(x_ref, w1_ref, s1_ref, b1_ref, wm_ref, sm_ref, bm_ref,
               w2_ref, s2_ref, b2_ref, ls_ref, ml_ref, mr_ref, o_ref, pad_ref):
        x32 = x_ref[0]                                    # (C, N), lane-dense f32

        # fc1 (1x1 conv) + folded BN + GELU.  bf16 MXU operands, f32 accumulate.
        h = jnp.dot(w1_ref[...].astype(jnp.bfloat16), x32.astype(jnp.bfloat16),
                    preferred_element_type=jnp.float32)   # (hid, N)
        h = _gelu(h * s1_ref[...] + b1_ref[...])

        # 3x3 depthwise conv, padding=1.
        # Stage h into a lane-padded scratch: only the two border slabs are
        # zeroed (aligned stores), the interior is rewritten every step.
        pad_ref[:, :P] = jnp.zeros((hid, P), jnp.float32)
        pad_ref[:, P + N:] = jnp.zeros((hid, P), jnp.float32)
        pad_ref[:, P:P + N] = h                           # aligned interior store

        acc = wm_ref[4] * h                               # center tap (ky=kx=0)
        for ky in (-1, 0, 1):
            for kx in (-1, 0, 1):
                if ky == 0 and kx == 0:
                    continue
                d = ky * W + kx
                win = pad_ref[:, P + d:P + d + N]         # static shifted window
                if kx == -1:
                    win = win * ml_ref[...]               # mask wrapped w-1 reads
                elif kx == 1:
                    win = win * mr_ref[...]               # mask wrapped w+1 reads
                acc = acc + wm_ref[(ky + 1) * 3 + (kx + 1)] * win

        # mid BatchNorm (depthwise-conv bias folded in) + GELU
        m = _gelu(acc * sm_ref[...] + bm_ref[...])

        # fc2 (1x1 conv) + folded BatchNorm
        y = jnp.dot(w2_ref[...].astype(jnp.bfloat16), m.astype(jnp.bfloat16),
                    preferred_element_type=jnp.float32)   # (C, N)
        y = y * s2_ref[...] + b2_ref[...]

        # layer scale + residual; lane-dense (C, N) store.
        o_ref[0] = (x32 + ls_ref[...] * y).astype(o_ref.dtype)

    def full(shape):
        return pl.BlockSpec(shape, lambda b, _n=len(shape): (0,) * _n)

    grid_spec = pltpu.PrefetchScalarGridSpec(
        num_scalar_prefetch=0,
        grid=(B,),
        in_specs=[
            pl.BlockSpec((1, C, N), lambda b: (b, 0, 0)),         # x
            full((hid, C)), full((hid, 1)), full((hid, 1)),       # w1, bn1 scale/bias
            full((9, hid, 1)), full((hid, 1)), full((hid, 1)),    # dw taps, bn_mid
            full((C, hid)), full((C, 1)), full((C, 1)),           # w2, bn2 scale/bias
            full((C, 1)),                                         # layer_scale_2
            full((1, N)), full((1, N)),                           # w-boundary masks
        ],
        out_specs=pl.BlockSpec((1, C, N), lambda b: (b, 0, 0)),
        scratch_shapes=[pltpu.VMEM((hid, N + 2 * P), jnp.float32)],
    )

    out = pl.pallas_call(
        kernel,
        out_shape=jax.ShapeDtypeStruct((B, C, N), jnp.float32),
        grid_spec=grid_spec,
        compiler_params=pltpu.CompilerParams(dimension_semantics=("parallel",)),
    )(x, params["w1"], params["scale1"], params["bias1"],
      params["wm"], params["scale_m"], params["bias_m"],
      params["w2"], params["scale2"], params["bias2"], params["ls"],
      mask_l, mask_r)

    return out.reshape(B, C, H, W)                                # pure reshape


# ---------------------------------------------------------------------------
# Deterministic parameter construction (shapes from the module __init__).
# BatchNorm runs in inference mode; conv bias + BN are folded to scale/bias.
# ---------------------------------------------------------------------------
def make_params(key, dim, mlp_ratio=4.0, eps=1e-5, layer_scale_init=1e-5):
    hid = int(dim * mlp_ratio)
    ks = jax.random.split(key, 18)
    nrm = lambda k, shape, s=1.0: s * jax.random.normal(k, shape, jnp.float32)

    # fc1: Conv2d(dim, hid, 1) -> weight (hid, dim) ; norm1: BatchNorm2d(hid)
    w1 = nrm(ks[0], (hid, dim), 1.0 / math.sqrt(dim))
    fc1_b = nrm(ks[1], (hid,), 0.1)
    g1, be1 = 1.0 + nrm(ks[2], (hid,), 0.1), nrm(ks[3], (hid,), 0.1)
    m1, v1 = nrm(ks[4], (hid,), 0.1), 0.5 + jnp.abs(nrm(ks[5], (hid,)))
    s1 = g1 / jnp.sqrt(v1 + eps)
    b1 = (fc1_b - m1) * s1 + be1

    # mid: depthwise Conv2d(hid, hid, 3, padding=1, groups=hid) ; mid_norm
    wm = nrm(ks[6], (9, hid), 1.0 / 3.0)          # tap index = (ky+1)*3 + (kx+1)
    mid_b = nrm(ks[7], (hid,), 0.1)
    gm, bem = 1.0 + nrm(ks[8], (hid,), 0.1), nrm(ks[9], (hid,), 0.1)
    mm, vm = nrm(ks[10], (hid,), 0.1), 0.5 + jnp.abs(nrm(ks[11], (hid,)))
    sm = gm / jnp.sqrt(vm + eps)
    bm = (mid_b - mm) * sm + bem

    # fc2: Conv2d(hid, dim, 1) -> weight (dim, hid) ; norm2: BatchNorm2d(dim)
    w2 = nrm(ks[12], (dim, hid), 1.0 / math.sqrt(hid))
    fc2_b = nrm(ks[13], (dim,), 0.1)
    g2, be2 = 1.0 + nrm(ks[14], (dim,), 0.1), nrm(ks[15], (dim,), 0.1)
    m2, v2 = nrm(ks[16], (dim,), 0.1), 0.5 + jnp.abs(nrm(ks[17], (dim,)))
    s2 = g2 / jnp.sqrt(v2 + eps)
    b2 = (fc2_b - m2) * s2 + be2

    ls = layer_scale_init * jnp.ones((dim,), jnp.float32)  # layer_scale_2

    col = lambda a: a.reshape(-1, 1)   # per-channel columns, broadcast along lanes
    return dict(w1=w1, scale1=col(s1), bias1=col(b1),
                wm=wm.reshape(9, hid, 1), scale_m=col(sm), bias_m=col(bm),
                w2=w2, scale2=col(s2), bias2=col(b2), ls=col(ls))


# ---------------------------------------------------------------------------
# Pure-JAX reference (for a correctness check against the kernel).
# ---------------------------------------------------------------------------
def ffn_reference(x_nchw, params):
    x = jnp.transpose(x_nchw, (0, 2, 3, 1)).astype(jnp.float32)   # NHWC (ref only)
    hid = params["w1"].shape[0]
    h = jnp.einsum("bhwc,dc->bhwd", x, params["w1"])
    h = h * params["scale1"].reshape(-1) + params["bias1"].reshape(-1)
    h = jax.nn.gelu(h, approximate=False)
    k = params["wm"].reshape(3, 3, 1, hid)
    h = jax.lax.conv_general_dilated(
        h, k, window_strides=(1, 1), padding=((1, 1), (1, 1)),
        dimension_numbers=("NHWC", "HWIO", "NHWC"),
        feature_group_count=hid)
    h = h * params["scale_m"].reshape(-1) + params["bias_m"].reshape(-1)
    h = jax.nn.gelu(h, approximate=False)
    y = jnp.einsum("bhwd,cd->bhwc", h, params["w2"])
    y = y * params["scale2"].reshape(-1) + params["bias2"].reshape(-1)
    out = x + params["ls"].reshape(-1) * y
    return jnp.transpose(out, (0, 3, 1, 2))


if __name__ == "__main__":
    B, dim, H, W = 2, 8, 16, 16          # NCHW input like the PyTorch module
    key = jax.random.PRNGKey(0)
    kx, kp = jax.random.split(key)
    x = jax.random.normal(kx, (B, dim, H, W), jnp.float32)
    params = make_params(kp, dim, mlp_ratio=4.0)

    out = jax.jit(ffn_forward)(x, params)
    out = jax.block_until_ready(out)

    ref = ffn_reference(x, params)
    np.testing.assert_allclose(np.asarray(out), np.asarray(ref),
                               atol=1e-4, rtol=1e-4)
    print("KERNEL_OK")
</pallas_src>

<mosaic_0001>
module attributes {stable_mosaic.version = 11 : i64} {
  func.func @kernel(%arg0: i32, %arg1: memref<1x8x256xf32, #tpu.memory_space<vmem>>, %arg2: memref<32x8xf32, #tpu.memory_space<vmem>>, %arg3: memref<32x1xf32, #tpu.memory_space<vmem>>, %arg4: memref<32x1xf32, #tpu.memory_space<vmem>>, %arg5: memref<9x32x1xf32, #tpu.memory_space<vmem>>, %arg6: memref<32x1xf32, #tpu.memory_space<vmem>>, %arg7: memref<32x1xf32, #tpu.memory_space<vmem>>, %arg8: memref<8x32xf32, #tpu.memory_space<vmem>>, %arg9: memref<8x1xf32, #tpu.memory_space<vmem>>, %arg10: memref<8x1xf32, #tpu.memory_space<vmem>>, %arg11: memref<8x1xf32, #tpu.memory_space<vmem>>, %arg12: memref<1x256xf32, #tpu.memory_space<vmem>>, %arg13: memref<1x256xf32, #tpu.memory_space<vmem>>, %arg14: memref<1x8x256xf32, #tpu.memory_space<vmem>>, %arg15: memref<32x512xf32, #tpu.memory_space<vmem>>) attributes {dimension_semantics = [#tpu.dimension_semantics<parallel>], iteration_bounds = array<i64: 2>, scalar_prefetch = 0 : i64, scratch_operands = 1 : i64, tpu.core_type = #tpu.core_type<tc>, window_params = [{transform_indices = @transform_0, window_bounds = array<i64: 1, 8, 256>}, {pipeline_mode = #tpu.pipeline_mode<synchronous>, transform_indices = @transform_1, window_bounds = array<i64: 32, 8>}, {pipeline_mode = #tpu.pipeline_mode<synchronous>, transform_indices = @transform_2, window_bounds = array<i64: 32, 1>}, {pipeline_mode = #tpu.pipeline_mode<synchronous>, transform_indices = @transform_3, window_bounds = array<i64: 32, 1>}, {pipeline_mode = #tpu.pipeline_mode<synchronous>, transform_indices = @transform_4, window_bounds = array<i64: 9, 32, 1>}, {pipeline_mode = #tpu.pipeline_mode<synchronous>, transform_indices = @transform_5, window_bounds = array<i64: 32, 1>}, {pipeline_mode = #tpu.pipeline_mode<synchronous>, transform_indices = @transform_6, window_bounds = array<i64: 32, 1>}, {pipeline_mode = #tpu.pipeline_mode<synchronous>, transform_indices = @transform_7, window_bounds = array<i64: 8, 32>}, {pipeline_mode = #tpu.pipeline_mode<synchronous>, transform_indices = @transform_8, window_bounds = array<i64: 8, 1>}, {pipeline_mode = #tpu.pipeline_mode<synchronous>, transform_indices = @transform_9, window_bounds = array<i64: 8, 1>}, {pipeline_mode = #tpu.pipeline_mode<synchronous>, transform_indices = @transform_10, window_bounds = array<i64: 8, 1>}, {pipeline_mode = #tpu.pipeline_mode<synchronous>, transform_indices = @transform_11, window_bounds = array<i64: 1, 256>}, {pipeline_mode = #tpu.pipeline_mode<synchronous>, transform_indices = @transform_12, window_bounds = array<i64: 1, 256>}, {transform_indices = @transform_13, window_bounds = array<i64: 1, 8, 256>}]} {
    %c0 = arith.constant 0 : index
    %c0_0 = arith.constant 0 : index
    %c0_1 = arith.constant 0 : index
    %0 = vector.load %arg1[%c0, %c0_0, %c0_1] : memref<1x8x256xf32, #tpu.memory_space<vmem>>, vector<1x8x256xf32>
    %1 = vector.shape_cast %0 : vector<1x8x256xf32> to vector<8x256xf32>
    %c0_2 = arith.constant 0 : index
    %c0_3 = arith.constant 0 : index
    %2 = vector.load %arg2[%c0_2, %c0_3] : memref<32x8xf32, #tpu.memory_space<vmem>>, vector<32x8xf32>
    %3 = arith.truncf %2 : vector<32x8xf32> to vector<32x8xbf16>
    %4 = arith.truncf %1 : vector<8x256xf32> to vector<8x256xbf16>
    %cst = arith.constant dense<0.000000e+00> : vector<32x256xf32>
    %5 = tpu.matmul %3, %4, %cst {dimension_numbers = #tpu.dot_dimension_numbers<[1], [0], [0], [1], [0, 0, 1, 1], [], []>} : vector<32x8xbf16>, vector<8x256xbf16>, vector<32x256xf32> -> vector<32x256xf32>
    %c0_4 = arith.constant 0 : index
    %c0_5 = arith.constant 0 : index
    %6 = vector.load %arg3[%c0_4, %c0_5] : memref<32x1xf32, #tpu.memory_space<vmem>>, vector<32x1xf32>
    %7 = vector.broadcast %6 : vector<32x1xf32> to vector<32x256xf32>
    %8 = arith.mulf %5, %7 : vector<32x256xf32>
    %c0_6 = arith.constant 0 : index
    %c0_7 = arith.constant 0 : index
    %9 = vector.load %arg4[%c0_6, %c0_7] : memref<32x1xf32, #tpu.memory_space<vmem>>, vector<32x1xf32>
    %10 = vector.broadcast %9 : vector<32x1xf32> to vector<32x256xf32>
    %11 = arith.addf %8, %10 : vector<32x256xf32>
    %cst_8 = arith.constant 5.000000e-01 : f32
    %12 = vector.broadcast %cst_8 : f32 to vector<32x256xf32>
    %13 = arith.mulf %12, %11 : vector<32x256xf32>
    %cst_9 = arith.constant 0.707106769 : f32
    %14 = vector.broadcast %cst_9 : f32 to vector<32x256xf32>
    %15 = arith.mulf %11, %14 : vector<32x256xf32>
    %cst_10 = arith.constant -4.000000e+00 : f32
    %cst_11 = arith.constant 4.000000e+00 : f32
    %16 = vector.broadcast %cst_10 : f32 to vector<32x256xf32>
    %17 = arith.maximumf %16, %15 : vector<32x256xf32>
    %18 = vector.broadcast %cst_11 : f32 to vector<32x256xf32>
    %19 = arith.minimumf %18, %17 : vector<32x256xf32>
    %20 = arith.mulf %19, %19 : vector<32x256xf32>
    %cst_12 = arith.constant -2.72614237E-10 : f32
    %21 = vector.broadcast %cst_12 : f32 to vector<32x256xf32>
    %22 = arith.mulf %21, %20 : vector<32x256xf32>
    %cst_13 = arith.constant 2.77068146E-8 : f32
    %23 = vector.broadcast %cst_13 : f32 to vector<32x256xf32>
    %24 = arith.addf %22, %23 : vector<32x256xf32>
    %25 = arith.mulf %24, %20 : vector<32x256xf32>
    %cst_14 = arith.constant -2.10102394E-6 : f32
    %26 = vector.broadcast %cst_14 : f32 to vector<32x256xf32>
    %27 = arith.addf %25, %26 : vector<32x256xf32>
    %28 = arith.mulf %27, %20 : vector<32x256xf32>
    %cst_15 = arith.constant -5.69250624E-5 : f32
    %29 = vector.broadcast %cst_15 : f32 to vector<32x256xf32>
    %30 = arith.addf %28, %29 : vector<32x256xf32>
    %31 = arith.mulf %30, %20 : vector<32x256xf32>
    %cst_16 = arith.constant -7.34990637E-4 : f32
    %32 = vector.broadcast %cst_16 : f32 to vector<32x256xf32>
    %33 = arith.addf %31, %32 : vector<32x256xf32>
    %34 = arith.mulf %33, %20 : vector<32x256xf32>
    %cst_17 = arith.constant -2.954600e-03 : f32
    %35 = vector.broadcast %cst_17 : f32 to vector<32x256xf32>
    %36 = arith.addf %34, %35 : vector<32x256xf32>
    %37 = arith.mulf %36, %20 : vector<32x256xf32>
    %cst_18 = arith.constant -0.0160960332 : f32
    %38 = vector.broadcast %cst_18 : f32 to vector<32x256xf32>
    %39 = arith.addf %37, %38 : vector<32x256xf32>
    %cst_19 = arith.constant -1.45660715E-5 : f32
    %40 = vector.broadcast %cst_19 : f32 to vector<32x256xf32>
    %41 = arith.mulf %40, %20 : vector<32x256xf32>
    %cst_20 = arith.constant -2.13374049E-4 : f32
    %42 = vector.broadcast %cst_20 : f32 to vector<32x256xf32>
    %43 = arith.addf %41, %42 : vector<32x256xf32>
    %44 = arith.mulf %43, %20 : vector<32x256xf32>
    %cst_21 = arith.constant -0.00168282702 : f32
    %45 = vector.broadcast %cst_21 : f32 to vector<32x256xf32>
    %46 = arith.addf %44, %45 : vector<32x256xf32>
    %47 = arith.mulf %46, %20 : vector<32x256xf32>
    %cst_22 = arith.constant -0.00737332925 : f32
    %48 = vector.broadcast %cst_22 : f32 to vector<32x256xf32>
    %49 = arith.addf %47, %48 : vector<32x256xf32>
    %50 = arith.mulf %49, %20 : vector<32x256xf32>
    %cst_23 = arith.constant -0.0142647391 : f32
    %51 = vector.broadcast %cst_23 : f32 to vector<32x256xf32>
    %52 = arith.addf %50, %51 : vector<32x256xf32>
    %53 = arith.mulf %19, %39 : vector<32x256xf32>
    %54 = tpu.reciprocal %52 {approx = true} : vector<32x256xf32> -> vector<32x256xf32>
    %55 = arith.mulf %53, %54 : vector<32x256xf32>
    %cst_24 = arith.constant 1.000000e+00 : f32
    %56 = vector.broadcast %cst_24 : f32 to vector<32x256xf32>
    %57 = arith.addf %56, %55 : vector<32x256xf32>
    %58 = arith.mulf %13, %57 : vector<32x256xf32>
    %cst_25 = arith.constant 0.000000e+00 : f32
    %59 = vector.broadcast %cst_25 : f32 to vector<32x128xf32>
    %c0_26 = arith.constant 0 : index
    %c0_27 = arith.constant 0 : index
    %60 = vector.load %arg15[%c0_26, %c0_27] : memref<32x512xf32, #tpu.memory_space<vmem>>, vector<32x128xf32>
    tpu.vector_store %arg15[%c0_26, %c0_27], %59 {strides = array<i32>} : memref<32x512xf32, #tpu.memory_space<vmem>>, vector<32x128xf32>,
    %cst_28 = arith.constant 0.000000e+00 : f32
    %61 = vector.broadcast %cst_28 : f32 to vector<32x128xf32>
    %c0_29 = arith.constant 0 : index
    %c384 = arith.constant 384 : index
    %62 = vector.load %arg15[%c0_29, %c384] : memref<32x512xf32, #tpu.memory_space<vmem>>, vector<32x128xf32>
    tpu.vector_store %arg15[%c0_29, %c384], %61 {strides = array<i32>} : memref<32x512xf32, #tpu.memory_space<vmem>>, vector<32x128xf32>,
    %c0_30 = arith.constant 0 : index
    %c128 = arith.constant 128 : index
    %63 = vector.load %arg15[%c0_30, %c128] : memref<32x512xf32, #tpu.memory_space<vmem>>, vector<32x256xf32>
    tpu.vector_store %arg15[%c0_30, %c128], %58 {strides = array<i32>} : memref<32x512xf32, #tpu.memory_space<vmem>>, vector<32x256xf32>,
    %c4 = arith.constant 4 : index
    %c0_31 = arith.constant 0 : index
    %c0_32 = arith.constant 0 : index
    %64 = vector.load %arg5[%c4, %c0_31, %c0_32] : memref<9x32x1xf32, #tpu.memory_space<vmem>>, vector<1x32x1xf32>
    %65 = vector.shape_cast %64 : vector<1x32x1xf32> to vector<32x1xf32>
    %66 = vector.broadcast %65 : vector<32x1xf32> to vector<32x256xf32>
    %67 = arith.mulf %66, %58 : vector<32x256xf32>
    %c0_33 = arith.constant 0 : index
    %c111 = arith.constant 111 : index
    %68 = vector.load %arg15[%c0_33, %c111] : memref<32x512xf32, #tpu.memory_space<vmem>>, vector<32x256xf32>
    %c0_34 = arith.constant 0 : index
    %c0_35 = arith.constant 0 : index
    %69 = vector.load %arg12[%c0_34, %c0_35] : memref<1x256xf32, #tpu.memory_space<vmem>>, vector<1x256xf32>
    %70 = vector.broadcast %69 : vector<1x256xf32> to vector<32x256xf32>
    %71 = arith.mulf %68, %70 : vector<32x256xf32>
    %c0_36 = arith.constant 0 : index
    %c0_37 = arith.constant 0 : index
    %c0_38 = arith.constant 0 : index
    %72 = vector.load %arg5[%c0_36, %c0_37, %c0_38] : memref<9x32x1xf32, #tpu.memory_space<vmem>>, vector<1x32x1xf32>
    %73 = vector.shape_cast %72 : vector<1x32x1xf32> to vector<32x1xf32>
    %74 = vector.broadcast %73 : vector<32x1xf32> to vector<32x256xf32>
    %75 = arith.mulf %74, %71 : vector<32x256xf32>
    %76 = arith.addf %67, %75 : vector<32x256xf32>
    %c0_39 = arith.constant 0 : index
    %c112 = arith.constant 112 : index
    %77 = vector.load %arg15[%c0_39, %c112] : memref<32x512xf32, #tpu.memory_space<vmem>>, vector<32x256xf32>
    %c1 = arith.constant 1 : index
    %c0_40 = arith.constant 0 : index
    %c0_41 = arith.constant 0 : index
    %78 = vector.load %arg5[%c1, %c0_40, %c0_41] : memref<9x32x1xf32, #tpu.memory_space<vmem>>, vector<1x32x1xf32>
    %79 = vector.shape_cast %78 : vector<1x32x1xf32> to vector<32x1xf32>
    %80 = vector.broadcast %79 : vector<32x1xf32> to vector<32x256xf32>
    %81 = arith.mulf %80, %77 : vector<32x256xf32>
    %82 = arith.addf %76, %81 : vector<32x256xf32>
    %c0_42 = arith.constant 0 : index
    %c113 = arith.constant 113 : index
    %83 = vector.load %arg15[%c0_42, %c113] : memref<32x512xf32, #tpu.memory_space<vmem>>, vector<32x256xf32>
    %c0_43 = arith.constant 0 : index
    %c0_44 = arith.constant 0 : index
    %84 = vector.load %arg13[%c0_43, %c0_44] : memref<1x256xf32, #tpu.memory_space<vmem>>, vector<1x256xf32>
    %85 = vector.broadcast %84 : vector<1x256xf32> to vector<32x256xf32>
    %86 = arith.mulf %83, %85 : vector<32x256xf32>
    %c2 = arith.constant 2 : index
    %c0_45 = arith.constant 0 : index
    %c0_46 = arith.constant 0 : index
    %87 = vector.load %arg5[%c2, %c0_45, %c0_46] : memref<9x32x1xf32, #tpu.memory_space<vmem>>, vector<1x32x1xf32>
    %88 = vector.shape_cast %87 : vector<1x32x1xf32> to vector<32x1xf32>
    %89 = vector.broadcast %88 : vector<32x1xf32> to vector<32x256xf32>
    %90 = arith.mulf %89, %86 : vector<32x256xf32>
    %91 = arith.addf %82, %90 : vector<32x256xf32>
    %c0_47 = arith.constant 0 : index
    %c127 = arith.constant 127 : index
    %92 = vector.load %arg15[%c0_47, %c127] : memref<32x512xf32, #tpu.memory_space<vmem>>, vector<32x256xf32>
    %c0_48 = arith.constant 0 : index
    %c0_49 = arith.constant 0 : index
    %93 = vector.load %arg12[%c0_48, %c0_49] : memref<1x256xf32, #tpu.memory_space<vmem>>, vector<1x256xf32>
    %94 = vector.broadcast %93 : vector<1x256xf32> to vector<32x256xf32>
    %95 = arith.mulf %92, %94 : vector<32x256xf32>
    %c3 = arith.constant 3 : index
    %c0_50 = arith.constant 0 : index
    %c0_51 = arith.constant 0 : index
    %96 = vector.load %arg5[%c3, %c0_50, %c0_51] : memref<9x32x1xf32, #tpu.memory_space<vmem>>, vector<1x32x1xf32>
    %97 = vector.shape_cast %96 : vector<1x32x1xf32> to vector<32x1xf32>
    %98 = vector.broadcast %97 : vector<32x1xf32> to vector<32x256xf32>
    %99 = arith.mulf %98, %95 : vector<32x256xf32>
    %100 = arith.addf %91, %99 : vector<32x256xf32>
    %c0_52 = arith.constant 0 : index
    %c129 = arith.constant 129 : index
    %101 = vector.load %arg15[%c0_52, %c129] : memref<32x512xf32, #tpu.memory_space<vmem>>, vector<32x256xf32>
    %c0_53 = arith.constant 0 : index
    %c0_54 = arith.constant 0 : index
    %102 = vector.load %arg13[%c0_53, %c0_54] : memref<1x256xf32, #tpu.memory_space<vmem>>, vector<1x256xf32>
    %103 = vector.broadcast %102 : vector<1x256xf32> to vector<32x256xf32>
    %104 = arith.mulf %101, %103 : vector<32x256xf32>
    %c5 = arith.constant 5 : index
    %c0_55 = arith.constant 0 : index
    %c0_56 = arith.constant 0 : index
    %105 = vector.load %arg5[%c5, %c0_55, %c0_56] : memref<9x32x1xf32, #tpu.memory_space<vmem>>, vector<1x32x1xf32>
    %106 = vector.shape_cast %105 : vector<1x32x1xf32> to vector<32x1xf32>
    %107 = vector.broadcast %106 : vector<32x1xf32> to vector<32x256xf32>
    %108 = arith.mulf %107, %104 : vector<32x256xf32>
    %109 = arith.addf %100, %108 : vector<32x256xf32>
    %c0_57 = arith.constant 0 : index
    %c143 = arith.constant 143 : index
    %110 = vector.load %arg15[%c0_57, %c143] : memref<32x512xf32, #tpu.memory_space<vmem>>, vector<32x256xf32>
    %c0_58 = arith.constant 0 : index
    %c0_59 = arith.constant 0 : index
    %111 = vector.load %arg12[%c0_58, %c0_59] : memref<1x256xf32, #tpu.memory_space<vmem>>, vector<1x256xf32>
    %112 = vector.broadcast %111 : vector<1x256xf32> to vector<32x256xf32>
    %113 = arith.mulf %110, %112 : vector<32x256xf32>
    %c6 = arith.constant 6 : index
    %c0_60 = arith.constant 0 : index
    %c0_61 = arith.constant 0 : index
    %114 = vector.load %arg5[%c6, %c0_60, %c0_61] : memref<9x32x1xf32, #tpu.memory_space<vmem>>, vector<1x32x1xf32>
    %115 = vector.shape_cast %114 : vector<1x32x1xf32> to vector<32x1xf32>
    %116 = vector.broadcast %115 : vector<32x1xf32> to vector<32x256xf32>
    %117 = arith.mulf %116, %113 : vector<32x256xf32>
    %118 = arith.addf %109, %117 : vector<32x256xf32>
    %c0_62 = arith.constant 0 : index
    %c144 = arith.constant 144 : index
    %119 = vector.load %arg15[%c0_62, %c144] : memref<32x512xf32, #tpu.memory_space<vmem>>, vector<32x256xf32>
    %c7 = arith.constant 7 : index
    %c0_63 = arith.constant 0 : index
    %c0_64 = arith.constant 0 : index
    %120 = vector.load %arg5[%c7, %c0_63, %c0_64] : memref<9x32x1xf32, #tpu.memory_space<vmem>>, vector<1x32x1xf32>
    %121 = vector.shape_cast %120 : vector<1x32x1xf32> to vector<32x1xf32>
    %122 = vector.broadcast %121 : vector<32x1xf32> to vector<32x256xf32>
    %123 = arith.mulf %122, %119 : vector<32x256xf32>
    %124 = arith.addf %118, %123 : vector<32x256xf32>
    %c0_65 = arith.constant 0 : index
    %c145 = arith.constant 145 : index
    %125 = vector.load %arg15[%c0_65, %c145] : memref<32x512xf32, #tpu.memory_space<vmem>>, vector<32x256xf32>
    %c0_66 = arith.constant 0 : index
    %c0_67 = arith.constant 0 : index
    %126 = vector.load %arg13[%c0_66, %c0_67] : memref<1x256xf32, #tpu.memory_space<vmem>>, vector<1x256xf32>
    %127 = vector.broadcast %126 : vector<1x256xf32> to vector<32x256xf32>
    %128 = arith.mulf %125, %127 : vector<32x256xf32>
    %c8 = arith.constant 8 : index
    %c0_68 = arith.constant 0 : index
    %c0_69 = arith.constant 0 : index
    %129 = vector.load %arg5[%c8, %c0_68, %c0_69] : memref<9x32x1xf32, #tpu.memory_space<vmem>>, vector<1x32x1xf32>
    %130 = vector.shape_cast %129 : vector<1x32x1xf32> to vector<32x1xf32>
    %131 = vector.broadcast %130 : vector<32x1xf32> to vector<32x256xf32>
    %132 = arith.mulf %131, %128 : vector<32x256xf32>
    %133 = arith.addf %124, %132 : vector<32x256xf32>
    %c0_70 = arith.constant 0 : index
    %c0_71 = arith.constant 0 : index
    %134 = vector.load %arg6[%c0_70, %c0_71] : memref<32x1xf32, #tpu.memory_space<vmem>>, vector<32x1xf32>
    %135 = vector.broadcast %134 : vector<32x1xf32> to vector<32x256xf32>
    %136 = arith.mulf %133, %135 : vector<32x256xf32>
    %c0_72 = arith.constant 0 : index
    %c0_73 = arith.constant 0 : index
    %137 = vector.load %arg7[%c0_72, %c0_73] : memref<32x1xf32, #tpu.memory_space<vmem>>, vector<32x1xf32>
    %138 = vector.broadcast %137 : vector<32x1xf32> to vector<32x256xf32>
    %139 = arith.addf %136, %138 : vector<32x256xf32>
    %cst_74 = arith.constant 5.000000e-01 : f32
    %140 = vector.broadcast %cst_74 : f32 to vector<32x256xf32>
    %141 = arith.mulf %140, %139 : vector<32x256xf32>
    %cst_75 = arith.constant 0.707106769 : f32
    %142 = vector.broadcast %cst_75 : f32 to vector<32x256xf32>
    %143 = arith.mulf %139, %142 : vector<32x256xf32>
    %cst_76 = arith.constant -4.000000e+00 : f32
    %cst_77 = arith.constant 4.000000e+00 : f32
    %144 = vector.broadcast %cst_76 : f32 to vector<32x256xf32>
    %145 = arith.maximumf %144, %143 : vector<32x256xf32>
    %146 = vector.broadcast %cst_77 : f32 to vector<32x256xf32>
    %147 = arith.minimumf %146, %145 : vector<32x256xf32>
    %148 = arith.mulf %147, %147 : vector<32x256xf32>
    %cst_78 = arith.constant -2.72614237E-10 : f32
    %149 = vector.broadcast %cst_78 : f32 to vector<32x256xf32>
    %150 = arith.mulf %149, %148 : vector<32x256xf32>
    %cst_79 = arith.constant 2.77068146E-8 : f32
    %151 = vector.broadcast %cst_79 : f32 to vector<32x256xf32>
    %152 = arith.addf %150, %151 : vector<32x256xf32>
    %153 = arith.mulf %152, %148 : vector<32x256xf32>
    %cst_80 = arith.constant -2.10102394E-6 : f32
    %154 = vector.broadcast %cst_80 : f32 to vector<32x256xf32>
    %155 = arith.addf %153, %154 : vector<32x256xf32>
    %156 = arith.mulf %155, %148 : vector<32x256xf32>
    %cst_81 = arith.constant -5.69250624E-5 : f32
    %157 = vector.broadcast %cst_81 : f32 to vector<32x256xf32>
    %158 = arith.addf %156, %157 : vector<32x256xf32>
    %159 = arith.mulf %158, %148 : vector<32x256xf32>
    %cst_82 = arith.constant -7.34990637E-4 : f32
    %160 = vector.broadcast %cst_82 : f32 to vector<32x256xf32>
    %161 = arith.addf %159, %160 : vector<32x256xf32>
    %162 = arith.mulf %161, %148 : vector<32x256xf32>
    %cst_83 = arith.constant -2.954600e-03 : f32
    %163 = vector.broadcast %cst_83 : f32 to vector<32x256xf32>
    %164 = arith.addf %162, %163 : vector<32x256xf32>
    %165 = arith.mulf %164, %148 : vector<32x256xf32>
    %cst_84 = arith.constant -0.0160960332 : f32
    %166 = vector.broadcast %cst_84 : f32 to vector<32x256xf32>
    %167 = arith.addf %165, %166 : vector<32x256xf32>
    %cst_85 = arith.constant -1.45660715E-5 : f32
    %168 = vector.broadcast %cst_85 : f32 to vector<32x256xf32>
    %169 = arith.mulf %168, %148 : vector<32x256xf32>
    %cst_86 = arith.constant -2.13374049E-4 : f32
    %170 = vector.broadcast %cst_86 : f32 to vector<32x256xf32>
    %171 = arith.addf %169, %170 : vector<32x256xf32>
    %172 = arith.mulf %171, %148 : vector<32x256xf32>
    %cst_87 = arith.constant -0.00168282702 : f32
    %173 = vector.broadcast %cst_87 : f32 to vector<32x256xf32>
    %174 = arith.addf %172, %173 : vector<32x256xf32>
    %175 = arith.mulf %174, %148 : vector<32x256xf32>
    %cst_88 = arith.constant -0.00737332925 : f32
    %176 = vector.broadcast %cst_88 : f32 to vector<32x256xf32>
    %177 = arith.addf %175, %176 : vector<32x256xf32>
    %178 = arith.mulf %177, %148 : vector<32x256xf32>
    %cst_89 = arith.constant -0.0142647391 : f32
    %179 = vector.broadcast %cst_89 : f32 to vector<32x256xf32>
    %180 = arith.addf %178, %179 : vector<32x256xf32>
    %181 = arith.mulf %147, %167 : vector<32x256xf32>
    %182 = tpu.reciprocal %180 {approx = true} : vector<32x256xf32> -> vector<32x256xf32>
    %183 = arith.mulf %181, %182 : vector<32x256xf32>
    %cst_90 = arith.constant 1.000000e+00 : f32
    %184 = vector.broadcast %cst_90 : f32 to vector<32x256xf32>
    %185 = arith.addf %184, %183 : vector<32x256xf32>
    %186 = arith.mulf %141, %185 : vector<32x256xf32>
    %c0_91 = arith.constant 0 : index
    %c0_92 = arith.constant 0 : index
    %187 = vector.load %arg8[%c0_91, %c0_92] : memref<8x32xf32, #tpu.memory_space<vmem>>, vector<8x32xf32>
    %188 = arith.truncf %187 : vector<8x32xf32> to vector<8x32xbf16>
    %189 = arith.truncf %186 : vector<32x256xf32> to vector<32x256xbf16>
    %cst_93 = arith.constant dense<0.000000e+00> : vector<8x256xf32>
    %190 = tpu.matmul %188, %189, %cst_93 {dimension_numbers = #tpu.dot_dimension_numbers<[1], [0], [0], [1], [0, 0, 1, 1], [], []>} : vector<8x32xbf16>, vector<32x256xbf16>, vector<8x256xf32> -> vector<8x256xf32>
    %c0_94 = arith.constant 0 : index
    %c0_95 = arith.constant 0 : index
    %191 = vector.load %arg9[%c0_94, %c0_95] : memref<8x1xf32, #tpu.memory_space<vmem>>, vector<8x1xf32>
    %192 = vector.broadcast %191 : vector<8x1xf32> to vector<8x256xf32>
    %193 = arith.mulf %190, %192 : vector<8x256xf32>
    %c0_96 = arith.constant 0 : index
    %c0_97 = arith.constant 0 : index
    %194 = vector.load %arg10[%c0_96, %c0_97] : memref<8x1xf32, #tpu.memory_space<vmem>>, vector<8x1xf32>
    %195 = vector.broadcast %194 : vector<8x1xf32> to vector<8x256xf32>
    %196 = arith.addf %193, %195 : vector<8x256xf32>
    %c0_98 = arith.constant 0 : index
    %c0_99 = arith.constant 0 : index
    %197 = vector.load %arg11[%c0_98, %c0_99] : memref<8x1xf32, #tpu.memory_space<vmem>>, vector<8x1xf32>
    %198 = vector.broadcast %197 : vector<8x1xf32> to vector<8x256xf32>
    %199 = arith.mulf %198, %196 : vector<8x256xf32>
    %200 = arith.addf %1, %199 : vector<8x256xf32>
    %c0_100 = arith.constant 0 : index
    %c0_101 = arith.constant 0 : index
    %c0_102 = arith.constant 0 : index
    %201 = vector.load %arg14[%c0_100, %c0_101, %c0_102] : memref<1x8x256xf32, #tpu.memory_space<vmem>>, vector<1x8x256xf32>
    %202 = vector.shape_cast %201 : vector<1x8x256xf32> to vector<8x256xf32>
    %203 = vector.shape_cast %200 : vector<8x256xf32> to vector<1x8x256xf32>
    tpu.vector_store %arg14[%c0_100, %c0_101, %c0_102], %203 {strides = array<i32>} : memref<1x8x256xf32, #tpu.memory_space<vmem>>, vector<1x8x256xf32>,
    return
  }
  func.func @transform_0(%arg0: i32) -> (i32, i32, i32) {
    %c0_i32 = arith.constant 0 : i32
    %c0_i32_0 = arith.constant 0 : i32
    %c0_i32_1 = arith.constant 0 : i32
    return %arg0, %c0_i32, %c0_i32_0 : i32, i32, i32
  }
  func.func @transform_1(%arg0: i32) -> (i32, i32) {
    %c0_i32 = arith.constant 0 : i32
    %c0_i32_0 = arith.constant 0 : i32
    %c0_i32_1 = arith.constant 0 : i32
    return %c0_i32, %c0_i32_0 : i32, i32
  }
  func.func @transform_2(%arg0: i32) -> (i32, i32) {
    %c0_i32 = arith.constant 0 : i32
    %c0_i32_0 = arith.constant 0 : i32
    %c0_i32_1 = arith.constant 0 : i32
    return %c0_i32, %c0_i32_0 : i32, i32
  }
  func.func @transform_3(%arg0: i32) -> (i32, i32) {
    %c0_i32 = arith.constant 0 : i32
    %c0_i32_0 = arith.constant 0 : i32
    %c0_i32_1 = arith.constant 0 : i32
    return %c0_i32, %c0_i32_0 : i32, i32
  }
  func.func @transform_4(%arg0: i32) -> (i32, i32, i32) {
    %c0_i32 = arith.constant 0 : i32
    %c0_i32_0 = arith.constant 0 : i32
    %c0_i32_1 = arith.constant 0 : i32
    %c0_i32_2 = arith.constant 0 : i32
    return %c0_i32, %c0_i32_0, %c0_i32_1 : i32, i32, i32
  }
  func.func @transform_5(%arg0: i32) -> (i32, i32) {
    %c0_i32 = arith.constant 0 : i32
    %c0_i32_0 = arith.constant 0 : i32
    %c0_i32_1 = arith.constant 0 : i32
    return %c0_i32, %c0_i32_0 : i32, i32
  }
  func.func @transform_6(%arg0: i32) -> (i32, i32) {
    %c0_i32 = arith.constant 0 : i32
    %c0_i32_0 = arith.constant 0 : i32
    %c0_i32_1 = arith.constant 0 : i32
    return %c0_i32, %c0_i32_0 : i32, i32
  }
  func.func @transform_7(%arg0: i32) -> (i32, i32) {
    %c0_i32 = arith.constant 0 : i32
    %c0_i32_0 = arith.constant 0 : i32
    %c0_i32_1 = arith.constant 0 : i32
    return %c0_i32, %c0_i32_0 : i32, i32
  }
  func.func @transform_8(%arg0: i32) -> (i32, i32) {
    %c0_i32 = arith.constant 0 : i32
    %c0_i32_0 = arith.constant 0 : i32
    %c0_i32_1 = arith.constant 0 : i32
    return %c0_i32, %c0_i32_0 : i32, i32
  }
  func.func @transform_9(%arg0: i32) -> (i32, i32) {
    %c0_i32 = arith.constant 0 : i32
    %c0_i32_0 = arith.constant 0 : i32
    %c0_i32_1 = arith.constant 0 : i32
    return %c0_i32, %c0_i32_0 : i32, i32
  }
  func.func @transform_10(%arg0: i32) -> (i32, i32) {
    %c0_i32 = arith.constant 0 : i32
    %c0_i32_0 = arith.constant 0 : i32
    %c0_i32_1 = arith.constant 0 : i32
    return %c0_i32, %c0_i32_0 : i32, i32
  }
  func.func @transform_11(%arg0: i32) -> (i32, i32) {
    %c0_i32 = arith.constant 0 : i32
    %c0_i32_0 = arith.constant 0 : i32
    %c0_i32_1 = arith.constant 0 : i32
    return %c0_i32, %c0_i32_0 : i32, i32
  }
  func.func @transform_12(%arg0: i32) -> (i32, i32) {
    %c0_i32 = arith.constant 0 : i32
    %c0_i32_0 = arith.constant 0 : i32
    %c0_i32_1 = arith.constant 0 : i32
    return %c0_i32, %c0_i32_0 : i32, i32
  }
  func.func @transform_13(%arg0: i32) -> (i32, i32, i32) {
    %c0_i32 = arith.constant 0 : i32
    %c0_i32_0 = arith.constant 0 : i32
    %c0_i32_1 = arith.constant 0 : i32
    return %arg0, %c0_i32, %c0_i32_0 : i32, i32, i32
  }
}

</mosaic_0001>

<llo_original>
// kernel: ffn_forward.1
$region0: #{ffn_forward.1}
  #allocation0 [shape = 'u32[]', space=smem, size = 0x4, offset = 0x4, fixed_abs, tag = 'smem constant byte address 0x4 - core index']
  #allocation1 [shape = 'u32[144,128]{1,0:T(1,128)}', space=vmem, size = 0x12000, scoped, tag = 'internal scratch']
  #allocation2 [shape = 'f32[32,512]{1,0:T(8,128)}', space=vmem, size = 0x10000, scoped, tag = 'scratch operand']
  %s0 = inlined_call_operand.vmem [shape: f32[2,8,256], index: 0, kind: input, shape index: {}]
  %s1 = inlined_call_operand.vmem [shape: f32[32,8], index: 1, kind: input, shape index: {}]
  %s2 = inlined_call_operand.vmem [shape: f32[32,1], index: 2, kind: input, shape index: {}]
  %s3 = inlined_call_operand.vmem [shape: f32[32,1], index: 3, kind: input, shape index: {}]
  %s4 = inlined_call_operand.vmem [shape: f32[9,32,1], index: 4, kind: input, shape index: {}]
  %s5 = inlined_call_operand.vmem [shape: f32[32,1], index: 5, kind: input, shape index: {}]
  %s6 = inlined_call_operand.vmem [shape: f32[32,1], index: 6, kind: input, shape index: {}]
  %s7 = inlined_call_operand.vmem [shape: f32[8,32], index: 7, kind: input, shape index: {}]
  %s8 = inlined_call_operand.vmem [shape: f32[8,1], index: 8, kind: input, shape index: {}]
  %s9 = inlined_call_operand.vmem [shape: f32[8,1], index: 9, kind: input, shape index: {}]
  %s10 = inlined_call_operand.vmem [shape: f32[8,1], index: 10, kind: input, shape index: {}]
  %s11 = inlined_call_operand.vmem [shape: f32[1,256], index: 11, kind: input, shape index: {}]
  %s12 = inlined_call_operand.vmem [shape: f32[1,256], index: 12, kind: input, shape index: {}]
  %s13 = inlined_call_operand.vmem [shape: f32[2,8,256], index: 13, kind: output, shape index: {}]
  %s14 = sld [smem:[#allocation0]]
  $region85: #{ffn_forward.1} parent=0
    _
  %s16 = ssub.s32 1, %s14
  %s17 = scalar_select 0, %s16, %s14
  loop: start=0, step=1, limit=4
  $region2: #{ffn_forward.1} parent=0 // loop_pre_header
    _
  $region3: #{ffn_forward.1} parent=0 // loop_header
    %s19 = sphi 0, %s23
    %p20 = scmp.ge.s32.totalorder %s19, 4
    %s29 = sphi 0, %s31
    %s32 = sphi 0, %s29
    %s33 = sphi 0, %s32
    %s49 = sphi 0, %s33
    %s53 = sphi 0, %s53
    %s55 = sphi 0, %s53
    %s56 = sphi 0, %s55
    %s70 = sphi 0, %s56
    %s74 = sphi 0, %s74
    %s76 = sphi 0, %s74
    %s77 = sphi 0, %s76
    %s91 = sphi 0, %s77
    %s95 = sphi 0, %s95
    %s97 = sphi 0, %s95
    %s98 = sphi 0, %s97
    %s112 = sphi 0, %s98
    %s116 = sphi 0, %s116
    %s118 = sphi 0, %s116
    %s119 = sphi 0, %s118
    %s133 = sphi 0, %s119
    %s137 = sphi 0, %s137
    %s139 = sphi 0, %s137
    %s140 = sphi 0, %s139
    %s154 = sphi 0, %s140
    %s158 = sphi 0, %s158
    %s160 = sphi 0, %s158
    %s161 = sphi 0, %s160
    %s175 = sphi 0, %s161
    %s179 = sphi 0, %s179
    %s181 = sphi 0, %s179
    %s182 = sphi 0, %s181
    %s196 = sphi 0, %s182
    %s200 = sphi 0, %s200
    %s202 = sphi 0, %s200
    %s203 = sphi 0, %s202
    %s217 = sphi 0, %s203
    %s221 = sphi 0, %s221
    %s223 = sphi 0, %s221
    %s224 = sphi 0, %s223
    %s238 = sphi 0, %s224
    %s242 = sphi 0, %s242
    %s244 = sphi 0, %s242
    %s245 = sphi 0, %s244
    %s259 = sphi 0, %s245
    %s263 = sphi 0, %s263
    %s265 = sphi 0, %s263
    %s266 = sphi 0, %s265
    %s280 = sphi 0, %s266
    %s284 = sphi 0, %s284
    %s286 = sphi 0, %s284
    %s287 = sphi 0, %s286
    %s301 = sphi 0, %s287
    %s307 = sphi 0, %s309
    %s310 = sphi 0, %s307
    %s311 = sphi 0, %s310
    %s327 = sphi 0, %s311
  $region4: #{ffn_forward.1} parent=0 // loop_header_branch
    %22 = sbr.rel (%p20) target = $region8
  $region5: #{ffn_forward.1} parent=0 // loop_body
    %s24 = ssub.s32 %s19, 1
    %s25 = ssub.s32 %s19, 2
    %s26 = sadd.s32 %s19, 1
    %s27 = ssub.s32 %s19, %s26
    %p28 = scmp.eq.s32.totalorder %s27, 0
    %s30 = sadd.s32 %s29, 1
    %s31 = scalar_select %p28, %s29, %s30
    %p34 = pneg %p28
    %p35 = scmp.eq.s32.totalorder %s19, 1
    %p36 = por %p34, %p35
    %p37 = scmp.ne.s32.totalorder %s29, %s32
    %p38 = scmp.eq.s32.totalorder %s19, 0
    %p39 = por %p37, %p38
    %p40 = scmp.ne.s32.totalorder %s29, %s32
    %p41 = scmp.eq.s32.totalorder %s24, 1
    %p42 = por %p40, %p41
    %p43 = scmp.ne.s32.totalorder %s32, %s33
    %p44 = scmp.eq.s32.totalorder %s24, 0
    %p45 = por %p43, %p44
    %p46 = scmp.ne.s32.totalorder %s32, %s33
    %p47 = scmp.eq.s32.totalorder %s25, 1
    %p48 = por %p46, %p47
    %p50 = scmp.ne.s32.totalorder %s33, %s49
    %p51 = scmp.eq.s32.totalorder %s25, 0
    %p52 = por %p50, %p51
    %s54 = sadd.s32 %s53, 1
    %p57 = scmp.eq.s32.totalorder %s19, 1
    %p58 = scmp.ne.s32.totalorder %s53, %s55
    %p59 = scmp.eq.s32.totalorder %s19, 0
    %p60 = por %p58, %p59
    %p61 = scmp.ne.s32.totalorder %s53, %s55
    %p62 = scmp.eq.s32.totalorder %s24, 1
    %p63 = por %p61, %p62
    %p64 = scmp.ne.s32.totalorder %s55, %s56
    %p65 = scmp.eq.s32.totalorder %s24, 0
    %p66 = por %p64, %p65
    %p67 = scmp.ne.s32.totalorder %s55, %s56
    %p68 = scmp.eq.s32.totalorder %s25, 1
    %p69 = por %p67, %p68
    %p71 = scmp.ne.s32.totalorder %s56, %s70
    %p72 = scmp.eq.s32.totalorder %s25, 0
    %p73 = por %p71, %p72
    %s75 = sadd.s32 %s74, 1
    %p78 = scmp.eq.s32.totalorder %s19, 1
    %p79 = scmp.ne.s32.totalorder %s74, %s76
    %p80 = scmp.eq.s32.totalorder %s19, 0
    %p81 = por %p79, %p80
    %p82 = scmp.ne.s32.totalorder %s74, %s76
    %p83 = scmp.eq.s32.totalorder %s24, 1
    %p84 = por %p82, %p83
    %p85 = scmp.ne.s32.totalorder %s76, %s77
    %p86 = scmp.eq.s32.totalorder %s24, 0
    %p87 = por %p85, %p86
    %p88 = scmp.ne.s32.totalorder %s76, %s77
    %p89 = scmp.eq.s32.totalorder %s25, 1
    %p90 = por %p88, %p89
    %p92 = scmp.ne.s32.totalorder %s77, %s91
    %p93 = scmp.eq.s32.totalorder %s25, 0
    %p94 = por %p92, %p93
    %s96 = sadd.s32 %s95, 1
    %p99 = scmp.eq.s32.totalorder %s19, 1
    %p100 = scmp.ne.s32.totalorder %s95, %s97
    %p101 = scmp.eq.s32.totalorder %s19, 0
    %p102 = por %p100, %p101
    %p103 = scmp.ne.s32.totalorder %s95, %s97
    %p104 = scmp.eq.s32.totalorder %s24, 1
    %p105 = por %p103, %p104
    %p106 = scmp.ne.s32.totalorder %s97, %s98
    %p107 = scmp.eq.s32.totalorder %s24, 0
    %p108 = por %p106, %p107
    %p109 = scmp.ne.s32.totalorder %s97, %s98
    %p110 = scmp.eq.s32.totalorder %s25, 1
    %p111 = por %p109, %p110
    %p113 = scmp.ne.s32.totalorder %s98, %s112
    %p114 = scmp.eq.s32.totalorder %s25, 0
    %p115 = por %p113, %p114
    %s117 = sadd.s32 %s116, 1
    %p120 = scmp.eq.s32.totalorder %s19, 1
    %p121 = scmp.ne.s32.totalorder %s116, %s118
    %p122 = scmp.eq.s32.totalorder %s19, 0
    %p123 = por %p121, %p122
    %p124 = scmp.ne.s32.totalorder %s116, %s118
    %p125 = scmp.eq.s32.totalorder %s24, 1
    %p126 = por %p124, %p125
    %p127 = scmp.ne.s32.totalorder %s118, %s119
    %p128 = scmp.eq.s32.totalorder %s24, 0
    %p129 = por %p127, %p128
    %p130 = scmp.ne.s32.totalorder %s118, %s119
    %p131 = scmp.eq.s32.totalorder %s25, 1
    %p132 = por %p130, %p131
    %p134 = scmp.ne.s32.totalorder %s119, %s133
    %p135 = scmp.eq.s32.totalorder %s25, 0
    %p136 = por %p134, %p135
    %s138 = sadd.s32 %s137, 1
    %p141 = scmp.eq.s32.totalorder %s19, 1
    %p142 = scmp.ne.s32.totalorder %s137, %s139
    %p143 = scmp.eq.s32.totalorder %s19, 0
    %p144 = por %p142, %p143
    %p145 = scmp.ne.s32.totalorder %s137, %s139
    %p146 = scmp.eq.s32.totalorder %s24, 1
    %p147 = por %p145, %p146
    %p148 = scmp.ne.s32.totalorder %s139, %s140
    %p149 = scmp.eq.s32.totalorder %s24, 0
    %p150 = por %p148, %p149
    %p151 = scmp.ne.s32.totalorder %s139, %s140
    %p152 = scmp.eq.s32.totalorder %s25, 1
    %p153 = por %p151, %p152
    %p155 = scmp.ne.s32.totalorder %s140, %s154
    %p156 = scmp.eq.s32.totalorder %s25, 0
    %p157 = por %p155, %p156
    %s159 = sadd.s32 %s158, 1
    %p162 = scmp.eq.s32.totalorder %s19, 1
    %p163 = scmp.ne.s32.totalorder %s158, %s160
    %p164 = scmp.eq.s32.totalorder %s19, 0
    %p165 = por %p163, %p164
    %p166 = scmp.ne.s32.totalorder %s158, %s160
    %p167 = scmp.eq.s32.totalorder %s24, 1
    %p168 = por %p166, %p167
    %p169 = scmp.ne.s32.totalorder %s160, %s161
    %p170 = scmp.eq.s32.totalorder %s24, 0
    %p171 = por %p169, %p170
    %p172 = scmp.ne.s32.totalorder %s160, %s161
    %p173 = scmp.eq.s32.totalorder %s25, 1
    %p174 = por %p172, %p173
    %p176 = scmp.ne.s32.totalorder %s161, %s175
    %p177 = scmp.eq.s32.totalorder %s25, 0
    %p178 = por %p176, %p177
    %s180 = sadd.s32 %s179, 1
    %p183 = scmp.eq.s32.totalorder %s19, 1
    %p184 = scmp.ne.s32.totalorder %s179, %s181
    %p185 = scmp.eq.s32.totalorder %s19, 0
    %p186 = por %p184, %p185
    %p187 = scmp.ne.s32.totalorder %s179, %s181
    %p188 = scmp.eq.s32.totalorder %s24, 1
    %p189 = por %p187, %p188
    %p190 = scmp.ne.s32.totalorder %s181, %s182
    %p191 = scmp.eq.s32.totalorder %s24, 0
    %p192 = por %p190, %p191
    %p193 = scmp.ne.s32.totalorder %s181, %s182
    %p194 = scmp.eq.s32.totalorder %s25, 1
    %p195 = por %p193, %p194
    %p197 = scmp.ne.s32.totalorder %s182, %s196
    %p198 = scmp.eq.s32.totalorder %s25, 0
    %p199 = por %p197, %p198
    %s201 = sadd.s32 %s200, 1
    %p204 = scmp.eq.s32.totalorder %s19, 1
    %p205 = scmp.ne.s32.totalorder %s200, %s202
    %p206 = scmp.eq.s32.totalorder %s19, 0
    %p207 = por %p205, %p206
    %p208 = scmp.ne.s32.totalorder %s200, %s202
    %p209 = scmp.eq.s32.totalorder %s24, 1
    %p210 = por %p208, %p209
    %p211 = scmp.ne.s32.totalorder %s202, %s203
    %p212 = scmp.eq.s32.totalorder %s24, 0
    %p213 = por %p211, %p212
    %p214 = scmp.ne.s32.totalorder %s202, %s203
    %p215 = scmp.eq.s32.totalorder %s25, 1
    %p216 = por %p214, %p215
    %p218 = scmp.ne.s32.totalorder %s203, %s217
    %p219 = scmp.eq.s32.totalorder %s25, 0
    %p220 = por %p218, %p219
    %s222 = sadd.s32 %s221, 1
    %p225 = scmp.eq.s32.totalorder %s19, 1
    %p226 = scmp.ne.s32.totalorder %s221, %s223
    %p227 = scmp.eq.s32.totalorder %s19, 0
    %p228 = por %p226, %p227
    %p229 = scmp.ne.s32.totalorder %s221, %s223
    %p230 = scmp.eq.s32.totalorder %s24, 1
    %p231 = por %p229, %p230
    %p232 = scmp.ne.s32.totalorder %s223, %s224
    %p233 = scmp.eq.s32.totalorder %s24, 0
    %p234 = por %p232, %p233
    %p235 = scmp.ne.s32.totalorder %s223, %s224
    %p236 = scmp.eq.s32.totalorder %s25, 1
    %p237 = por %p235, %p236
    %p239 = scmp.ne.s32.totalorder %s224, %s238
    %p240 = scmp.eq.s32.totalorder %s25, 0
    %p241 = por %p239, %p240
    %s243 = sadd.s32 %s242, 1
    %p246 = scmp.eq.s32.totalorder %s19, 1
    %p247 = scmp.ne.s32.totalorder %s242, %s244
    %p248 = scmp.eq.s32.totalorder %s19, 0
    %p249 = por %p247, %p248
    %p250 = scmp.ne.s32.totalorder %s242, %s244
    %p251 = scmp.eq.s32.totalorder %s24, 1
    %p252 = por %p250, %p251
    %p253 = scmp.ne.s32.totalorder %s244, %s245
    %p254 = scmp.eq.s32.totalorder %s24, 0
    %p255 = por %p253, %p254
    %p256 = scmp.ne.s32.totalorder %s244, %s245
    %p257 = scmp.eq.s32.totalorder %s25, 1
    %p258 = por %p256, %p257
    %p260 = scmp.ne.s32.totalorder %s245, %s259
    %p261 = scmp.eq.s32.totalorder %s25, 0
    %p262 = por %p260, %p261
    %s264 = sadd.s32 %s263, 1
    %p267 = scmp.eq.s32.totalorder %s19, 1
    %p268 = scmp.ne.s32.totalorder %s263, %s265
    %p269 = scmp.eq.s32.totalorder %s19, 0
    %p270 = por %p268, %p269
    %p271 = scmp.ne.s32.totalorder %s263, %s265
    %p272 = scmp.eq.s32.totalorder %s24, 1
    %p273 = por %p271, %p272
    %p274 = scmp.ne.s32.totalorder %s265, %s266
    %p275 = scmp.eq.s32.totalorder %s24, 0
    %p276 = por %p274, %p275
    %p277 = scmp.ne.s32.totalorder %s265, %s266
    %p278 = scmp.eq.s32.totalorder %s25, 1
    %p279 = por %p277, %p278
    %p281 = scmp.ne.s32.totalorder %s266, %s280
    %p282 = scmp.eq.s32.totalorder %s25, 0
    %p283 = por %p281, %p282
    %s285 = sadd.s32 %s284, 1
    %p288 = scmp.eq.s32.totalorder %s19, 1
    %p289 = scmp.ne.s32.totalorder %s284, %s286
    %p290 = scmp.eq.s32.totalorder %s19, 0
    %p291 = por %p289, %p290
    %p292 = scmp.ne.s32.totalorder %s284, %s286
    %p293 = scmp.eq.s32.totalorder %s24, 1
    %p294 = por %p292, %p293
    %p295 = scmp.ne.s32.totalorder %s286, %s287
    %p296 = scmp.eq.s32.totalorder %s24, 0
    %p297 = por %p295, %p296
    %p298 = scmp.ne.s32.totalorder %s286, %s287
    %p299 = scmp.eq.s32.totalorder %s25, 1
    %p300 = por %p298, %p299
    %p302 = scmp.ne.s32.totalorder %s287, %s301
    %p303 = scmp.eq.s32.totalorder %s25, 0
    %p304 = por %p302, %p303
    %s305 = ssub.s32 %s19, %s26
    %p306 = scmp.eq.s32.totalorder %s305, 0
    %s308 = sadd.s32 %s307, 1
    %s309 = scalar_select %p306, %s307, %s308
    %p312 = pneg %p306
    %p313 = scmp.eq.s32.totalorder %s19, 1
    %p314 = por %p312, %p313
    %p315 = scmp.ne.s32.totalorder %s307, %s310
    %p316 = scmp.eq.s32.totalorder %s19, 0
    %p317 = por %p315, %p316
    %p318 = scmp.ne.s32.totalorder %s307, %s310
    %p319 = scmp.eq.s32.totalorder %s24, 1
    %p320 = por %p318, %p319
    %p321 = scmp.ne.s32.totalorder %s310, %s311
    %p322 = scmp.eq.s32.totalorder %s24, 0
    %p323 = por %p321, %p322
    %p324 = scmp.ne.s32.totalorder %s310, %s311
    %p325 = scmp.eq.s32.totalorder %s25, 1
    %p326 = por %p324, %p325
    %p328 = scmp.ne.s32.totalorder %s311, %s327
    %p329 = scmp.eq.s32.totalorder %s25, 0
    %p330 = por %p328, %p329
    %p331 = scmp.le.s32.totalorder 1, %s19
    %p332 = scmp.lt.s32.totalorder %s19, 3
    %p333 = pnand %p331, %p332
    %p334 = pneg %p333
    // Predicated region
    $region9: #{ffn_forward.1} parent=5 // pred_check
      _
    $region10: #{ffn_forward.1} parent=5 // pred_check_branch
      %336 = sbr.rel (%p333) target = $region12
    $region11: #{ffn_forward.1} parent=5 // pred_region
      %s337 = ssub.s32 %s19, 1
      // Predicated region
      $region13: #{ffn_forward.1} parent=11 // pred_check
        %p338 = pneg %p66
      $region14: #{ffn_forward.1} parent=11 // pred_check_branch
        %340 = sbr.rel (%p338) target = $region16
      $region15: #{ffn_forward.1} parent=11 // pred_region
        _
      $region16: #{ffn_forward.1} parent=11 // pred_fallthru
        _
      // Predicated region
      $region17: #{ffn_forward.1} parent=11 // pred_check
        %p341 = pneg %p87
      $region18: #{ffn_forward.1} parent=11 // pred_check_branch
        %343 = sbr.rel (%p341) target = $region20
      $region19: #{ffn_forward.1} parent=11 // pred_region
        _
      $region20: #{ffn_forward.1} parent=11 // pred_fallthru
        _
      // Predicated region
      $region21: #{ffn_forward.1} parent=11 // pred_check
        %p344 = pneg %p108
      $region22: #{ffn_forward.1} parent=11 // pred_check_branch
        %346 = sbr.rel (%p344) target = $region24
      $region23: #{ffn_forward.1} parent=11 // pred_region
        _
      $region24: #{ffn_forward.1} parent=11 // pred_fallthru
        _
      // Predicated region
      $region25: #{ffn_forward.1} parent=11 // pred_check
        %p347 = pneg %p129
      $region26: #{ffn_forward.1} parent=11 // pred_check_branch
        %349 = sbr.rel (%p347) target = $region28
      $region27: #{ffn_forward.1} parent=11 // pred_region
        _
      $region28: #{ffn_forward.1} parent=11 // pred_fallthru
        _
      // Predicated region
      $region29: #{ffn_forward.1} parent=11 // pred_check
        %p350 = pneg %p150
      $region30: #{ffn_forward.1} parent=11 // pred_check_branch
        %352 = sbr.rel (%p350) target = $region32
      $region31: #{ffn_forward.1} parent=11 // pred_region
        _
      $region32: #{ffn_forward.1} parent=11 // pred_fallthru
        _
      // Predicated region
      $region33: #{ffn_forward.1} parent=11 // pred_check
        %p353 = pneg %p171
      $region34: #{ffn_forward.1} parent=11 // pred_check_branch
        %355 = sbr.rel (%p353) target = $region36
      $region35: #{ffn_forward.1} parent=11 // pred_region
        _
      $region36: #{ffn_forward.1} parent=11 // pred_fallthru
        _
      // Predicated region
      $region37: #{ffn_forward.1} parent=11 // pred_check
        %p356 = pneg %p192
      $region38: #{ffn_forward.1} parent=11 // pred_check_branch
        %358 = sbr.rel (%p356) target = $region40
      $region39: #{ffn_forward.1} parent=11 // pred_region
        _
      $region40: #{ffn_forward.1} parent=11 // pred_fallthru
        _
      // Predicated region
      $region41: #{ffn_forward.1} parent=11 // pred_check
        %p359 = pneg %p213
      $region42: #{ffn_forward.1} parent=11 // pred_check_branch
        %361 = sbr.rel (%p359) target = $region44
      $region43: #{ffn_forward.1} parent=11 // pred_region
        _
      $region44: #{ffn_forward.1} parent=11 // pred_fallthru
        _
      // Predicated region
      $region45: #{ffn_forward.1} parent=11 // pred_check
        %p362 = pneg %p234
      $region46: #{ffn_forward.1} parent=11 // pred_check_branch
        %364 = sbr.rel (%p362) target = $region48
      $region47: #{ffn_forward.1} parent=11 // pred_region
        _
      $region48: #{ffn_forward.1} parent=11 // pred_fallthru
        _
      // Predicated region
      $region49: #{ffn_forward.1} parent=11 // pred_check
        %p365 = pneg %p255
      $region50: #{ffn_forward.1} parent=11 // pred_check_branch
        %367 = sbr.rel (%p365) target = $region52
      $region51: #{ffn_forward.1} parent=11 // pred_region
        _
      $region52: #{ffn_forward.1} parent=11 // pred_fallthru
        _
      // Predicated region
      $region53: #{ffn_forward.1} parent=11 // pred_check
        %p368 = pneg %p276
      $region54: #{ffn_forward.1} parent=11 // pred_check_branch
        %370 = sbr.rel (%p368) target = $region56
      $region55: #{ffn_forward.1} parent=11 // pred_region
        _
      $region56: #{ffn_forward.1} parent=11 // pred_fallthru
        _
      // Predicated region
      $region57: #{ffn_forward.1} parent=11 // pred_check
        %p371 = pneg %p297
      $region58: #{ffn_forward.1} parent=11 // pred_check_branch
        %373 = sbr.rel (%p371) target = $region60
      $region59: #{ffn_forward.1} parent=11 // pred_region
        _
      $region60: #{ffn_forward.1} parent=11 // pred_fallthru
        _
    $region12: #{ffn_forward.1} parent=5 // pred_fallthru
      _
    %p374 = scmp.lt.s32.totalorder %s19, 2
    // Predicated region
    $region61: #{ffn_forward.1} parent=5 // pred_check
      %p375 = pneg %p374
    $region62: #{ffn_forward.1} parent=5 // pred_check_branch
      %377 = sbr.rel (%p375) target = $region64
    $region63: #{ffn_forward.1} parent=5 // pred_region
      // Predicated region
      $region65: #{ffn_forward.1} parent=63 // pred_check
        %p378 = pneg %p39
      $region66: #{ffn_forward.1} parent=63 // pred_check_branch
        %380 = sbr.rel (%p378) target = $region68
      $region67: #{ffn_forward.1} parent=63 // pred_region
        %p381 = scmp.lt.s32.totalorder %s19, 1
        %s382 = scalar_select %p381, %s19, 1
        %s383 = smul.addr %s382, 2
        %s384 = smul.addr %s383, 8
        %s385 = scalar_lea.vmem %s0, %s384
      $region68: #{ffn_forward.1} parent=63 // pred_fallthru
        _
    $region64: #{ffn_forward.1} parent=5 // pred_fallthru
      _
    %p386 = scmp.le.s32.totalorder 1, %s19
    %p387 = scmp.lt.s32.totalorder %s19, 3
    %p388 = pnand %p386, %p387
    %p389 = pneg %p388
    // Predicated region
    $region69: #{ffn_forward.1} parent=5 // pred_check
      _
    $region70: #{ffn_forward.1} parent=5 // pred_check_branch
      %391 = sbr.rel (%p388) target = $region72
    $region71: #{ffn_forward.1} parent=5 // pred_region
      %s392 = ssub.s32 %s19, 1
      %p393 = scmp.lt.s32.totalorder %s24, 1
      %s394 = scalar_select %p393, %s24, 1
      %s395 = smul.addr %s394, 2
      %s396 = smul.addr %s395, 8
      %s397 = scalar_lea.vmem %s0, %s396
      %p398 = pneg %p45
      %p399 = pneg %p42
      %p400 = pneg %p66
      %p401 = pneg %p63
      %p402 = pneg %p87
      %p403 = pneg %p84
      %p404 = pneg %p108
      %p405 = pneg %p105
      %p406 = pneg %p129
      %p407 = pneg %p126
      %p408 = pneg %p150
      %p409 = pneg %p147
      %p410 = pneg %p171
      %p411 = pneg %p168
      %p412 = pneg %p192
      %p413 = pneg %p189
      %p414 = pneg %p213
      %p415 = pneg %p210
      %p416 = pneg %p234
      %p417 = pneg %p231
      %p418 = pneg %p255
      %p419 = pneg %p252
      %p420 = pneg %p276
      %p421 = pneg %p273
      %p422 = pneg %p297
      %p423 = pneg %p294
      %p424 = pneg %p323
      %p425 = pneg %p320
      %p426 = scmp.lt.s32.totalorder %s24, 1
      %s427 = scalar_select %p426, %s24, 1
      %s428 = smul.addr %s427, 2
      %s429 = smul.addr %s428, 8
      %s430 = scalar_lea.vmem %s13, %s429
      %p431 = scmp.lt.s32.totalorder %s24, 1
      %s432 = scalar_select %p431, %s24, 1
      %s433 = smul.addr %s432, 2
      %s434 = smul.addr %s433, 8
      %s435 = scalar_lea.vmem %s0, %s434
      %p436 = scmp.lt.s32.totalorder %s24, 1
      %s437 = scalar_select %p436, %s24, 1
      %s438 = smul.addr %s437, 2
      %s439 = smul.addr %s438, 8
      %s440 = scalar_lea.vmem %s13, %s439
      %v442 = vld [vmem:[%s435] sm:$0xff]
      %v443 = vld [vmem:[%s435 + $0x8] sm:$0xff]
      %v444 = vld [vmem:[%s1] sm:$0xff]
      %v445 = vld [vmem:[%s1 + $0x8] sm:$0xff]
      %v446 = vld [vmem:[%s1 + $0x10] sm:$0xff]
      %v447 = vld [vmem:[%s1 + $0x18] sm:$0xff]
      %v448 = vpack.c.bf16 %v445, %v444
      %v449 = vpack.c.bf16 %v447, %v446
      %v450 = vpack.c.bf16 %v442, %v442
      %v451 = vpack.c.bf16 %v443, %v443
      %vm452 = vcmask 64512
      %v454 = vsel %vm452, %v448, 0
      %v457 = vsel %vm452, %v449, 0
      %vm459 = vcmask 1043456
      %v461 = vsel %vm459, %v450, 0
      %v464 = vsel %vm459, %v451, 0
      %466 = vmatprep.subr.bf16.mxu0 0
      %467 = vmatpush1.bf16.msra.mxu0 0
      %468 = vmatprep.subr.bf16.mxu0 0
      %469 = vmatpush1.bf16.msra.mxu0 0
      %470 = vmatprep.subr.bf16.mxu0 0
      %471 = vmatpush1.bf16.msra.mxu0 0
      %472 = vmatprep.subr.bf16.mxu0 0
      %473 = vmatpush1.bf16.msra.mxu0 0
      %474 = vmatprep.subr.bf16.mxu0 0
      %475 = vmatpush1.bf16.msra.mxu0 0
      %476 = vmatprep.subr.bf16.mxu0 0
      %477 = vmatpush1.bf16.msra.mxu0 0
      %478 = vmatprep.subr.bf16.mxu0 0
      %479 = vmatpush1.bf16.msra.mxu0 0
      %480 = vmatprep.subr.bf16.mxu0 %v464
      %481 = vmatpush1.bf16.msra.mxu0 %v461
      %482 = vmatprep.subr.bf16.mxu0 0
      %483 = vmatpush2.bf16.msra.mxu0 0
      %484 = vmatprep.subr.bf16.mxu0 0
      %485 = vmatpush2.bf16.msra.mxu0 0
      %486 = vmatprep.subr.bf16.mxu0 0
      %487 = vmatpush2.bf16.msra.mxu0 0
      %488 = vmatprep.subr.bf16.mxu0 0
      %489 = vmatpush2.bf16.msra.mxu0 0
      %490 = vmatprep.subr.bf16.mxu0 0
      %491 = vmatpush2.bf16.msra.mxu0 0
      %492 = vmatprep.subr.bf16.mxu0 0
      %493 = vmatpush2.bf16.msra.mxu0 0
      %494 = vmatprep.subr.bf16.mxu0 0
      %495 = vmatpush2.bf16.msra.mxu0 0
      %496 = vmatprep.subr.bf16.mxu0 0
      %497 = vmatpush2.bf16.msra.mxu0 0
      %498 = vmatprep.mubr.bf16.mxu0 0
      %499 = vmatmul.mubr.bf16.gmra.mxu0 %v454
      %v500 = vpop.f32.mrf.mxu0
      %v501 = vadd.f32 0.0, %v500
      %v502 = vpop.f32.mrf.mxu0
      %v503 = vadd.f32 0.0, %v502
      %v504 = vpop.f32.mrf.mxu0
      %v505 = vadd.f32 0.0, %v504
      %v506 = vpop.f32.mrf.mxu0
      %v507 = vadd.f32 0.0, %v506
      %508 = vmatprep.mubr.bf16.mxu0 0
      %509 = vmatmul.mubr.bf16.gmra.mxu0 %v457
      %v510 = vpop.f32.mrf.mxu0
      %v511 = vadd.f32 0.0, %v510
      %v512 = vpop.f32.mrf.mxu0
      %v513 = vadd.f32 0.0, %v512
      %v514 = vpop.f32.mrf.mxu0
      %v515 = vadd.f32 0.0, %v514
      %v516 = vpop.f32.mrf.mxu0
      %v517 = vadd.f32 0.0, %v516
      %518 = vdwg.mxu0
      %v519 = vld [vmem:[%s2] sm:$0xff]
      %v520 = vld [vmem:[%s2 + $0x8] sm:$0xff]
      %v521 = vld [vmem:[%s2 + $0x10] sm:$0xff]
      %v522 = vld [vmem:[%s2 + $0x18] sm:$0xff]
      %524 = vset.pattern.permute.xlu0 0
      %525 = vperm.xlu0 %524, %v519
      %v526 = vpop.permute.xlu0 %525
      %529 = vset.pattern.permute.xlu0 0
      %530 = vperm.xlu0 %529, %v520
      %v531 = vpop.permute.xlu0 %530
      %534 = vset.pattern.permute.xlu0 0
      %535 = vperm.xlu0 %534, %v521
      %v536 = vpop.permute.xlu0 %535
      %539 = vset.pattern.permute.xlu0 0
      %540 = vperm.xlu0 %539, %v522
      %v541 = vpop.permute.xlu0 %540
      %v543 = vmul.f32 %v501, %v526
      %v544 = vmul.f32 %v503, %v526
      %v545 = vmul.f32 %v505, %v531
      %v546 = vmul.f32 %v507, %v531
      %v547 = vmul.f32 %v511, %v536
      %v548 = vmul.f32 %v513, %v536
      %v549 = vmul.f32 %v515, %v541
      %v550 = vmul.f32 %v517, %v541
      %v551 = vld [vmem:[%s3] sm:$0xff]
      %v552 = vld [vmem:[%s3 + $0x8] sm:$0xff]
      %v553 = vld [vmem:[%s3 + $0x10] sm:$0xff]
      %v554 = vld [vmem:[%s3 + $0x18] sm:$0xff]
      %556 = vset.pattern.permute.xlu0 0
      %557 = vperm.xlu0 %556, %v551
      %v558 = vpop.permute.xlu0 %557
      %561 = vset.pattern.permute.xlu0 0
      %562 = vperm.xlu0 %561, %v552
      %v563 = vpop.permute.xlu0 %562
      %566 = vset.pattern.permute.xlu0 0
      %567 = vperm.xlu0 %566, %v553
      %v568 = vpop.permute.xlu0 %567
      %571 = vset.pattern.permute.xlu0 0
      %572 = vperm.xlu0 %571, %v554
      %v573 = vpop.permute.xlu0 %572
      %v575 = vadd.f32 %v543, %v558
      %v576 = vadd.f32 %v544, %v558
      %v577 = vadd.f32 %v545, %v563
      %v578 = vadd.f32 %v546, %v563
      %v579 = vadd.f32 %v547, %v568
      %v580 = vadd.f32 %v548, %v568
      %v581 = vadd.f32 %v549, %v573
      %v582 = vadd.f32 %v550, %v573
      %v583 = vmul.f32 %v575, 0.5
      %v584 = vmul.f32 %v576, 0.5
      %v585 = vmul.f32 %v577, 0.5
      %v586 = vmul.f32 %v578, 0.5
      %v587 = vmul.f32 %v579, 0.5
      %v588 = vmul.f32 %v580, 0.5
      %v589 = vmul.f32 %v581, 0.5
      %v590 = vmul.f32 %v582, 0.5
      %v591 = vmul.f32 %v575, 0.70710677
      %v592 = vmul.f32 %v576, 0.70710677
      %v593 = vmul.f32 %v577, 0.70710677
      %v594 = vmul.f32 %v578, 0.70710677
      %v595 = vmul.f32 %v579, 0.70710677
      %v596 = vmul.f32 %v580, 0.70710677
      %v597 = vmul.f32 %v581, 0.70710677
      %v598 = vmul.f32 %v582, 0.70710677
      %v599 = vmax.f32 %v591, -4.0
      %v600 = vmax.f32 %v592, -4.0
      %v601 = vmax.f32 %v593, -4.0
      %v602 = vmax.f32 %v594, -4.0
      %v603 = vmax.f32 %v595, -4.0
      %v604 = vmax.f32 %v596, -4.0
      %v605 = vmax.f32 %v597, -4.0
      %v606 = vmax.f32 %v598, -4.0
      %v607 = vmin.f32 %v599, 4.0
      %v608 = vmin.f32 %v600, 4.0
      %v609 = vmin.f32 %v601, 4.0
      %v610 = vmin.f32 %v602, 4.0
      %v611 = vmin.f32 %v603, 4.0
      %v612 = vmin.f32 %v604, 4.0
      %v613 = vmin.f32 %v605, 4.0
      %v614 = vmin.f32 %v606, 4.0
      %v615 = vmul.f32 %v607, %v607
      %v616 = vmul.f32 %v608, %v608
      %v617 = vmul.f32 %v609, %v609
      %v618 = vmul.f32 %v610, %v610
      %v619 = vmul.f32 %v611, %v611
      %v620 = vmul.f32 %v612, %v612
      %v621 = vmul.f32 %v613, %v613
      %v622 = vmul.f32 %v614, %v614
      %v623 = vmul.f32 %v615, -2.7261424e-10
      %v624 = vmul.f32 %v616, -2.7261424e-10
      %v625 = vmul.f32 %v617, -2.7261424e-10
      %v626 = vmul.f32 %v618, -2.7261424e-10
      %v627 = vmul.f32 %v619, -2.7261424e-10
      %v628 = vmul.f32 %v620, -2.7261424e-10
      %v629 = vmul.f32 %v621, -2.7261424e-10
      %v630 = vmul.f32 %v622, -2.7261424e-10
      %v631 = vadd.f32 %v623, 2.7706815e-08
      %v632 = vadd.f32 %v624, 2.7706815e-08
      %v633 = vadd.f32 %v625, 2.7706815e-08
      %v634 = vadd.f32 %v626, 2.7706815e-08
      %v635 = vadd.f32 %v627, 2.7706815e-08
      %v636 = vadd.f32 %v628, 2.7706815e-08
      %v637 = vadd.f32 %v629, 2.7706815e-08
      %v638 = vadd.f32 %v630, 2.7706815e-08
      %v639 = vmul.f32 %v631, %v615
      %v640 = vmul.f32 %v632, %v616
      %v641 = vmul.f32 %v633, %v617
      %v642 = vmul.f32 %v634, %v618
      %v643 = vmul.f32 %v635, %v619
      %v644 = vmul.f32 %v636, %v620
      %v645 = vmul.f32 %v637, %v621
      %v646 = vmul.f32 %v638, %v622
      %v647 = vadd.f32 %v639, -2.101024e-06
      %v648 = vadd.f32 %v640, -2.101024e-06
      %v649 = vadd.f32 %v641, -2.101024e-06
      %v650 = vadd.f32 %v642, -2.101024e-06
      %v651 = vadd.f32 %v643, -2.101024e-06
      %v652 = vadd.f32 %v644, -2.101024e-06
      %v653 = vadd.f32 %v645, -2.101024e-06
      %v654 = vadd.f32 %v646, -2.101024e-06
      %v655 = vmul.f32 %v647, %v615
      %v656 = vmul.f32 %v648, %v616
      %v657 = vmul.f32 %v649, %v617
      %v658 = vmul.f32 %v650, %v618
      %v659 = vmul.f32 %v651, %v619
      %v660 = vmul.f32 %v652, %v620
      %v661 = vmul.f32 %v653, %v621
      %v662 = vmul.f32 %v654, %v622
      %v663 = vadd.f32 %v655, -5.6925062e-05
      %v664 = vadd.f32 %v656, -5.6925062e-05
      %v665 = vadd.f32 %v657, -5.6925062e-05
      %v666 = vadd.f32 %v658, -5.6925062e-05
      %v667 = vadd.f32 %v659, -5.6925062e-05
      %v668 = vadd.f32 %v660, -5.6925062e-05
      %v669 = vadd.f32 %v661, -5.6925062e-05
      %v670 = vadd.f32 %v662, -5.6925062e-05
      %v671 = vmul.f32 %v663, %v615
      %v672 = vmul.f32 %v664, %v616
      %v673 = vmul.f32 %v665, %v617
      %v674 = vmul.f32 %v666, %v618
      %v675 = vmul.f32 %v667, %v619
      %v676 = vmul.f32 %v668, %v620
      %v677 = vmul.f32 %v669, %v621
      %v678 = vmul.f32 %v670, %v622
      %v679 = vadd.f32 %v671, -0.00073499064
      %v680 = vadd.f32 %v672, -0.00073499064
      %v681 = vadd.f32 %v673, -0.00073499064
      %v682 = vadd.f32 %v674, -0.00073499064
      %v683 = vadd.f32 %v675, -0.00073499064
      %v684 = vadd.f32 %v676, -0.00073499064
      %v685 = vadd.f32 %v677, -0.00073499064
      %v686 = vadd.f32 %v678, -0.00073499064
      %v687 = vmul.f32 %v679, %v615
      %v688 = vmul.f32 %v680, %v616
      %v689 = vmul.f32 %v681, %v617
      %v690 = vmul.f32 %v682, %v618
      %v691 = vmul.f32 %v683, %v619
      %v692 = vmul.f32 %v684, %v620
      %v693 = vmul.f32 %v685, %v621
      %v694 = vmul.f32 %v686, %v622
      %v695 = vadd.f32 %v687, -0.0029546
      %v696 = vadd.f32 %v688, -0.0029546
      %v697 = vadd.f32 %v689, -0.0029546
      %v698 = vadd.f32 %v690, -0.0029546
      %v699 = vadd.f32 %v691, -0.0029546
      %v700 = vadd.f32 %v692, -0.0029546
      %v701 = vadd.f32 %v693, -0.0029546
      %v702 = vadd.f32 %v694, -0.0029546
      %v703 = vmul.f32 %v695, %v615
      %v704 = vmul.f32 %v696, %v616
      %v705 = vmul.f32 %v697, %v617
      %v706 = vmul.f32 %v698, %v618
      %v707 = vmul.f32 %v699, %v619
      %v708 = vmul.f32 %v700, %v620
      %v709 = vmul.f32 %v701, %v621
      %v710 = vmul.f32 %v702, %v622
      %v711 = vadd.f32 %v703, -0.016096033
      %v712 = vadd.f32 %v704, -0.016096033
      %v713 = vadd.f32 %v705, -0.016096033
      %v714 = vadd.f32 %v706, -0.016096033
      %v715 = vadd.f32 %v707, -0.016096033
      %v716 = vadd.f32 %v708, -0.016096033
      %v717 = vadd.f32 %v709, -0.016096033
      %v718 = vadd.f32 %v710, -0.016096033
      %v719 = vmul.f32 %v615, -1.45660715e-05
      %v720 = vmul.f32 %v616, -1.45660715e-05
      %v721 = vmul.f32 %v617, -1.45660715e-05
      %v722 = vmul.f32 %v618, -1.45660715e-05
      %v723 = vmul.f32 %v619, -1.45660715e-05
      %v724 = vmul.f32 %v620, -1.45660715e-05
      %v725 = vmul.f32 %v621, -1.45660715e-05
      %v726 = vmul.f32 %v622, -1.45660715e-05
      %v727 = vadd.f32 %v719, -0.00021337405
      %v728 = vadd.f32 %v720, -0.00021337405
      %v729 = vadd.f32 %v721, -0.00021337405
      %v730 = vadd.f32 %v722, -0.00021337405
      %v731 = vadd.f32 %v723, -0.00021337405
      %v732 = vadd.f32 %v724, -0.00021337405
      %v733 = vadd.f32 %v725, -0.00021337405
      %v734 = vadd.f32 %v726, -0.00021337405
      %v735 = vmul.f32 %v727, %v615
      %v736 = vmul.f32 %v728, %v616
      %v737 = vmul.f32 %v729, %v617
      %v738 = vmul.f32 %v730, %v618
      %v739 = vmul.f32 %v731, %v619
      %v740 = vmul.f32 %v732, %v620
      %v741 = vmul.f32 %v733, %v621
      %v742 = vmul.f32 %v734, %v622
      %v743 = vadd.f32 %v735, -0.001682827
      %v744 = vadd.f32 %v736, -0.001682827
      %v745 = vadd.f32 %v737, -0.001682827
      %v746 = vadd.f32 %v738, -0.001682827
      %v747 = vadd.f32 %v739, -0.001682827
      %v748 = vadd.f32 %v740, -0.001682827
      %v749 = vadd.f32 %v741, -0.001682827
      %v750 = vadd.f32 %v742, -0.001682827
      %v751 = vmul.f32 %v743, %v615
      %v752 = vmul.f32 %v744, %v616
      %v753 = vmul.f32 %v745, %v617
      %v754 = vmul.f32 %v746, %v618
      %v755 = vmul.f32 %v747, %v619
      %v756 = vmul.f32 %v748, %v620
      %v757 = vmul.f32 %v749, %v621
      %v758 = vmul.f32 %v750, %v622
      %v759 = vadd.f32 %v751, -0.0073733293
      %v760 = vadd.f32 %v752, -0.0073733293
      %v761 = vadd.f32 %v753, -0.0073733293
      %v762 = vadd.f32 %v754, -0.0073733293
      %v763 = vadd.f32 %v755, -0.0073733293
      %v764 = vadd.f32 %v756, -0.0073733293
      %v765 = vadd.f32 %v757, -0.0073733293
      %v766 = vadd.f32 %v758, -0.0073733293
      %v767 = vmul.f32 %v759, %v615
      %v768 = vmul.f32 %v760, %v616
      %v769 = vmul.f32 %v761, %v617
      %v770 = vmul.f32 %v762, %v618
      %v771 = vmul.f32 %v763, %v619
      %v772 = vmul.f32 %v764, %v620
      %v773 = vmul.f32 %v765, %v621
      %v774 = vmul.f32 %v766, %v622
      %v775 = vadd.f32 %v767, -0.014264739
      %v776 = vadd.f32 %v768, -0.014264739
      %v777 = vadd.f32 %v769, -0.014264739
      %v778 = vadd.f32 %v770, -0.014264739
      %v779 = vadd.f32 %v771, -0.014264739
      %v780 = vadd.f32 %v772, -0.014264739
      %v781 = vadd.f32 %v773, -0.014264739
      %v782 = vadd.f32 %v774, -0.014264739
      %v783 = vmul.f32 %v607, %v711
      %v784 = vmul.f32 %v608, %v712
      %v785 = vmul.f32 %v609, %v713
      %v786 = vmul.f32 %v610, %v714
      %v787 = vmul.f32 %v611, %v715
      %v788 = vmul.f32 %v612, %v716
      %v789 = vmul.f32 %v613, %v717
      %v790 = vmul.f32 %v614, %v718
      %v791 = vrcp.pop %v775
      %v792 = vrcp.pop %v776
      %v793 = vrcp.pop %v777
      %v794 = vrcp.pop %v778
      %v795 = vrcp.pop %v779
      %v796 = vrcp.pop %v780
      %v797 = vrcp.pop %v781
      %v798 = vrcp.pop %v782
      %v799 = vmul.f32 %v783, %v791
      %v800 = vmul.f32 %v784, %v792
      %v801 = vmul.f32 %v785, %v793
      %v802 = vmul.f32 %v786, %v794
      %v803 = vmul.f32 %v787, %v795
      %v804 = vmul.f32 %v788, %v796
      %v805 = vmul.f32 %v789, %v797
      %v806 = vmul.f32 %v790, %v798
      %v807 = vadd.f32 %v799, 1.0
      %v808 = vadd.f32 %v800, 1.0
      %v809 = vadd.f32 %v801, 1.0
      %v810 = vadd.f32 %v802, 1.0
      %v811 = vadd.f32 %v803, 1.0
      %v812 = vadd.f32 %v804, 1.0
      %v813 = vadd.f32 %v805, 1.0
      %v814 = vadd.f32 %v806, 1.0
      %v815 = vmul.f32 %v583, %v807
      %v816 = vmul.f32 %v584, %v808
      %v817 = vmul.f32 %v585, %v809
      %v818 = vmul.f32 %v586, %v810
      %v819 = vmul.f32 %v587, %v811
      %v820 = vmul.f32 %v588, %v812
      %v821 = vmul.f32 %v589, %v813
      %v822 = vmul.f32 %v590, %v814
      %823 = vst [vmem:[#allocation2] sm:$0xff] 0.0
      %824 = vst [vmem:[#allocation2 + $0x20] sm:$0xff] 0.0
      %825 = vst [vmem:[#allocation2 + $0x40] sm:$0xff] 0.0
      %826 = vst [vmem:[#allocation2 + $0x60] sm:$0xff] 0.0
      %827 = vst [vmem:[#allocation2 + $0x18] sm:$0xff] 0.0
      %828 = vst [vmem:[#allocation2 + $0x38] sm:$0xff] 0.0
      %829 = vst [vmem:[#allocation2 + $0x58] sm:$0xff] 0.0
      %830 = vst [vmem:[#allocation2 + $0x78] sm:$0xff] 0.0
      %831 = vst [vmem:[#allocation2 + $0x8] sm:$0xff] %v815
      %832 = vst [vmem:[#allocation2 + $0x10] sm:$0xff] %v816
      %833 = vst [vmem:[#allocation2 + $0x28] sm:$0xff] %v817
      %834 = vst [vmem:[#allocation2 + $0x30] sm:$0xff] %v818
      %835 = vst [vmem:[#allocation2 + $0x48] sm:$0xff] %v819
      %836 = vst [vmem:[#allocation2 + $0x50] sm:$0xff] %v820
      %837 = vst [vmem:[#allocation2 + $0x68] sm:$0xff] %v821
      %838 = vst [vmem:[#allocation2 + $0x70] sm:$0xff] %v822
      %s839 = scalar_lea.vmem %s4, 128
      %v840 = vld [vmem:[%s839] sm:$0xff]
      %v841 = vld [vmem:[%s839 + $0x8] sm:$0xff]
      %v842 = vld [vmem:[%s839 + $0x10] sm:$0xff]
      %v843 = vld [vmem:[%s839 + $0x18] sm:$0xff]
      %845 = vset.pattern.permute.xlu0 0
      %846 = vperm.xlu0 %845, %v840
      %v847 = vpop.permute.xlu0 %846
      %850 = vset.pattern.permute.xlu0 0
      %851 = vperm.xlu0 %850, %v841
      %v852 = vpop.permute.xlu0 %851
      %855 = vset.pattern.permute.xlu0 0
      %856 = vperm.xlu0 %855, %v842
      %v857 = vpop.permute.xlu0 %856
      %860 = vset.pattern.permute.xlu0 0
      %861 = vperm.xlu0 %860, %v843
      %v862 = vpop.permute.xlu0 %861
      %v864 = vmul.f32 %v847, %v815
      %v865 = vmul.f32 %v847, %v816
      %v866 = vmul.f32 %v852, %v817
      %v867 = vmul.f32 %v852, %v818
      %v868 = vmul.f32 %v857, %v819
      %v869 = vmul.f32 %v857, %v820
      %v870 = vmul.f32 %v862, %v821
      %v871 = vmul.f32 %v862, %v822
      %v872 = vld [vmem:[#allocation2] sm:$0xff]
      %v873 = vld [vmem:[#allocation2 + $0x8] sm:$0xff]
      %v874 = vld [vmem:[#allocation2 + $0x10] sm:$0xff]
      %v875 = vld [vmem:[#allocation2 + $0x20] sm:$0xff]
      %v876 = vld [vmem:[#allocation2 + $0x28] sm:$0xff]
      %v877 = vld [vmem:[#allocation2 + $0x30] sm:$0xff]
      %v878 = vld [vmem:[#allocation2 + $0x40] sm:$0xff]
      %v879 = vld [vmem:[#allocation2 + $0x48] sm:$0xff]
      %v880 = vld [vmem:[#allocation2 + $0x50] sm:$0xff]
      %v881 = vld [vmem:[#allocation2 + $0x60] sm:$0xff]
      %v882 = vld [vmem:[#allocation2 + $0x68] sm:$0xff]
      %v883 = vld [vmem:[#allocation2 + $0x70] sm:$0xff]
      %v884 = vld [vmem:[%s11] sm:$0x3]
      %v886 = vlaneseq
      %v887 = vshrl.u32 %v886, 7
      %v888 = vsub.s32 0, %v887
      %v889 = vrot.slane %v884, %v888
      %v890 = vlaneseq
      %v891 = vshrl.u32 %v890, 7
      %v892 = vsub.s32 1, %v891
      %v893 = vrot.slane %v884, %v892
      %894 = vrot.lane.b32.xlu0 %v889, 111
      %v895 = vpop.permute.xlu0 %894
      %896 = vrot.lane.b32.xlu0 %v893, 111
      %v897 = vpop.permute.xlu0 %896
      %vm898 = vcmask 908288
      %v899 = vsel %vm898, %v895, %v897
      %v903 = vmul.f32 %v872, %v895
      %v904 = vmul.f32 %v873, %v899
      %v905 = vmul.f32 %v874, %v897
      %v906 = vmul.f32 %v875, %v895
      %v907 = vmul.f32 %v876, %v899
      %v908 = vmul.f32 %v877, %v897
      %v909 = vmul.f32 %v878, %v895
      %v910 = vmul.f32 %v879, %v899
      %v911 = vmul.f32 %v880, %v897
      %v912 = vmul.f32 %v881, %v895
      %v913 = vmul.f32 %v882, %v899
      %v914 = vmul.f32 %v883, %v897
      %v915 = vld [vmem:[%s4] sm:$0xff]
      %v916 = vld [vmem:[%s4 + $0x8] sm:$0xff]
      %v917 = vld [vmem:[%s4 + $0x10] sm:$0xff]
      %v918 = vld [vmem:[%s4 + $0x18] sm:$0xff]
      %920 = vset.pattern.permute.xlu0 0
      %921 = vperm.xlu0 %920, %v915
      %v922 = vpop.permute.xlu0 %921
      %925 = vset.pattern.permute.xlu0 0
      %926 = vperm.xlu0 %925, %v916
      %v927 = vpop.permute.xlu0 %926
      %930 = vset.pattern.permute.xlu0 0
      %931 = vperm.xlu0 %930, %v917
      %v932 = vpop.permute.xlu0 %931
      %935 = vset.pattern.permute.xlu0 0
      %936 = vperm.xlu0 %935, %v918
      %v937 = vpop.permute.xlu0 %936
      %v939 = vmul.f32 %v922, %v903
      %v940 = vmul.f32 %v922, %v904
      %v941 = vmul.f32 %v922, %v905
      %v942 = vmul.f32 %v927, %v906
      %v943 = vmul.f32 %v927, %v907
      %v944 = vmul.f32 %v927, %v908
      %v945 = vmul.f32 %v932, %v909
      %v946 = vmul.f32 %v932, %v910
      %v947 = vmul.f32 %v932, %v911
      %v948 = vmul.f32 %v937, %v912
      %v949 = vmul.f32 %v937, %v913
      %v950 = vmul.f32 %v937, %v914
      %963 = vrot.lane.b32.xlu0 %v939, 17
      %v964 = vpop.permute.xlu0 %963
      %965 = vrot.lane.b32.xlu0 %v940, 17
      %v966 = vpop.permute.xlu0 %965
      %967 = vrot.lane.b32.xlu0 %v941, 17
      %v968 = vpop.permute.xlu0 %967
      %969 = vrot.lane.b32.xlu0 %v942, 17
      %v970 = vpop.permute.xlu0 %969
      %971 = vrot.lane.b32.xlu0 %v943, 17
      %v972 = vpop.permute.xlu0 %971
      %973 = vrot.lane.b32.xlu0 %v944, 17
      %v974 = vpop.permute.xlu0 %973
      %975 = vrot.lane.b32.xlu0 %v945, 17
      %v976 = vpop.permute.xlu0 %975
      %977 = vrot.lane.b32.xlu0 %v946, 17
      %v978 = vpop.permute.xlu0 %977
      %979 = vrot.lane.b32.xlu0 %v947, 17
      %v980 = vpop.permute.xlu0 %979
      %981 = vrot.lane.b32.xlu0 %v948, 17
      %v982 = vpop.permute.xlu0 %981
      %983 = vrot.lane.b32.xlu0 %v949, 17
      %v984 = vpop.permute.xlu0 %983
      %985 = vrot.lane.b32.xlu0 %v950, 17
      %v986 = vpop.permute.xlu0 %985
      %vm987 = vcmask 138240
      %v988 = vsel %vm987, %v964, %v966
      %v989 = vsel %vm987, %v966, %v968
      %v990 = vsel %vm987, %v970, %v972
      %v991 = vsel %vm987, %v972, %v974
      %v992 = vsel %vm987, %v976, %v978
      %v993 = vsel %vm987, %v978, %v980
      %v994 = vsel %vm987, %v982, %v984
      %v995 = vsel %vm987, %v984, %v986
      %v1004 = vadd.f32 %v864, %v988
      %v1005 = vadd.f32 %v865, %v989
      %v1006 = vadd.f32 %v866, %v990
      %v1007 = vadd.f32 %v867, %v991
      %v1008 = vadd.f32 %v868, %v992
      %v1009 = vadd.f32 %v869, %v993
      %v1010 = vadd.f32 %v870, %v994
      %v1011 = vadd.f32 %v871, %v995
      %s1012 = scalar_lea.vmem %s4, 32
      %v1013 = vld [vmem:[%s1012] sm:$0xff]
      %v1014 = vld [vmem:[%s1012 + $0x8] sm:$0xff]
      %v1015 = vld [vmem:[%s1012 + $0x10] sm:$0xff]
      %v1016 = vld [vmem:[%s1012 + $0x18] sm:$0xff]
      %1018 = vset.pattern.permute.xlu0 0
      %1019 = vperm.xlu0 %1018, %v1013
      %v1020 = vpop.permute.xlu0 %1019
      %1023 = vset.pattern.permute.xlu0 0
      %1024 = vperm.xlu0 %1023, %v1014
      %v1025 = vpop.permute.xlu0 %1024
      %1028 = vset.pattern.permute.xlu0 0
      %1029 = vperm.xlu0 %1028, %v1015
      %v1030 = vpop.permute.xlu0 %1029
      %1033 = vset.pattern.permute.xlu0 0
      %1034 = vperm.xlu0 %1033, %v1016
      %v1035 = vpop.permute.xlu0 %1034
      %v1037 = vmul.f32 %v1020, %v872
      %v1038 = vmul.f32 %v1020, %v873
      %v1039 = vmul.f32 %v1020, %v874
      %v1040 = vmul.f32 %v1025, %v875
      %v1041 = vmul.f32 %v1025, %v876
      %v1042 = vmul.f32 %v1025, %v877
      %v1043 = vmul.f32 %v1030, %v878
      %v1044 = vmul.f32 %v1030, %v879
      %v1045 = vmul.f32 %v1030, %v880
      %v1046 = vmul.f32 %v1035, %v881
      %v1047 = vmul.f32 %v1035, %v882
      %v1048 = vmul.f32 %v1035, %v883
      %1061 = vrot.lane.b32.xlu0 %v1037, 16
      %v1062 = vpop.permute.xlu0 %1061
      %1063 = vrot.lane.b32.xlu0 %v1038, 16
      %v1064 = vpop.permute.xlu0 %1063
      %1065 = vrot.lane.b32.xlu0 %v1039, 16
      %v1066 = vpop.permute.xlu0 %1065
      %1067 = vrot.lane.b32.xlu0 %v1040, 16
      %v1068 = vpop.permute.xlu0 %1067
      %1069 = vrot.lane.b32.xlu0 %v1041, 16
      %v1070 = vpop.permute.xlu0 %1069
      %1071 = vrot.lane.b32.xlu0 %v1042, 16
      %v1072 = vpop.permute.xlu0 %1071
      %1073 = vrot.lane.b32.xlu0 %v1043, 16
      %v1074 = vpop.permute.xlu0 %1073
      %1075 = vrot.lane.b32.xlu0 %v1044, 16
      %v1076 = vpop.permute.xlu0 %1075
      %1077 = vrot.lane.b32.xlu0 %v1045, 16
      %v1078 = vpop.permute.xlu0 %1077
      %1079 = vrot.lane.b32.xlu0 %v1046, 16
      %v1080 = vpop.permute.xlu0 %1079
      %1081 = vrot.lane.b32.xlu0 %v1047, 16
      %v1082 = vpop.permute.xlu0 %1081
      %1083 = vrot.lane.b32.xlu0 %v1048, 16
      %v1084 = vpop.permute.xlu0 %1083
      %vm1085 = vcmask 130048
      %v1086 = vsel %vm1085, %v1062, %v1064
      %v1087 = vsel %vm1085, %v1064, %v1066
      %v1088 = vsel %vm1085, %v1068, %v1070
      %v1089 = vsel %vm1085, %v1070, %v1072
      %v1090 = vsel %vm1085, %v1074, %v1076
      %v1091 = vsel %vm1085, %v1076, %v1078
      %v1092 = vsel %vm1085, %v1080, %v1082
      %v1093 = vsel %vm1085, %v1082, %v1084
      %v1102 = vadd.f32 %v1004, %v1086
      %v1103 = vadd.f32 %v1005, %v1087
      %v1104 = vadd.f32 %v1006, %v1088
      %v1105 = vadd.f32 %v1007, %v1089
      %v1106 = vadd.f32 %v1008, %v1090
      %v1107 = vadd.f32 %v1009, %v1091
      %v1108 = vadd.f32 %v1010, %v1092
      %v1109 = vadd.f32 %v1011, %v1093
      %v1110 = vld [vmem:[%s12] sm:$0x3]
      %v1112 = vlaneseq
      %v1113 = vshrl.u32 %v1112, 7
      %v1114 = vsub.s32 0, %v1113
      %v1115 = vrot.slane %v1110, %v1114
      %v1116 = vlaneseq
      %v1117 = vshrl.u32 %v1116, 7
      %v1118 = vsub.s32 1, %v1117
      %v1119 = vrot.slane %v1110, %v1118
      %1120 = vrot.lane.b32.xlu0 %v1115, 113
      %v1121 = vpop.permute.xlu0 %1120
      %1122 = vrot.lane.b32.xlu0 %v1119, 113
      %v1123 = vpop.permute.xlu0 %1122
      %vm1124 = vcmask 924672
      %v1125 = vsel %vm1124, %v1121, %v1123
      %v1129 = vmul.f32 %v872, %v1121
      %v1130 = vmul.f32 %v873, %v1125
      %v1131 = vmul.f32 %v874, %v1123
      %v1132 = vmul.f32 %v875, %v1121
      %v1133 = vmul.f32 %v876, %v1125
      %v1134 = vmul.f32 %v877, %v1123
      %v1135 = vmul.f32 %v878, %v1121
      %v1136 = vmul.f32 %v879, %v1125
      %v1137 = vmul.f32 %v880, %v1123
      %v1138 = vmul.f32 %v881, %v1121
      %v1139 = vmul.f32 %v882, %v1125
      %v1140 = vmul.f32 %v883, %v1123
      %s1141 = scalar_lea.vmem %s4, 64
      %v1142 = vld [vmem:[%s1141] sm:$0xff]
      %v1143 = vld [vmem:[%s1141 + $0x8] sm:$0xff]
      %v1144 = vld [vmem:[%s1141 + $0x10] sm:$0xff]
      %v1145 = vld [vmem:[%s1141 + $0x18] sm:$0xff]
      %1147 = vset.pattern.permute.xlu0 0
      %1148 = vperm.xlu0 %1147, %v1142
      %v1149 = vpop.permute.xlu0 %1148
      %1152 = vset.pattern.permute.xlu0 0
      %1153 = vperm.xlu0 %1152, %v1143
      %v1154 = vpop.permute.xlu0 %1153
      %1157 = vset.pattern.permute.xlu0 0
      %1158 = vperm.xlu0 %1157, %v1144
      %v1159 = vpop.permute.xlu0 %1158
      %1162 = vset.pattern.permute.xlu0 0
      %1163 = vperm.xlu0 %1162, %v1145
      %v1164 = vpop.permute.xlu0 %1163
      %v1166 = vmul.f32 %v1149, %v1129
      %v1167 = vmul.f32 %v1149, %v1130
      %v1168 = vmul.f32 %v1149, %v1131
      %v1169 = vmul.f32 %v1154, %v1132
      %v1170 = vmul.f32 %v1154, %v1133
      %v1171 = vmul.f32 %v1154, %v1134
      %v1172 = vmul.f32 %v1159, %v1135
      %v1173 = vmul.f32 %v1159, %v1136
      %v1174 = vmul.f32 %v1159, %v1137
      %v1175 = vmul.f32 %v1164, %v1138
      %v1176 = vmul.f32 %v1164, %v1139
      %v1177 = vmul.f32 %v1164, %v1140
      %1190 = vrot.lane.b32.xlu0 %v1166, 15
      %v1191 = vpop.permute.xlu0 %1190
      %1192 = vrot.lane.b32.xlu0 %v1167, 15
      %v1193 = vpop.permute.xlu0 %1192
      %1194 = vrot.lane.b32.xlu0 %v1168, 15
      %v1195 = vpop.permute.xlu0 %1194
      %1196 = vrot.lane.b32.xlu0 %v1169, 15
      %v1197 = vpop.permute.xlu0 %1196
      %1198 = vrot.lane.b32.xlu0 %v1170, 15
      %v1199 = vpop.permute.xlu0 %1198
      %1200 = vrot.lane.b32.xlu0 %v1171, 15
      %v1201 = vpop.permute.xlu0 %1200
      %1202 = vrot.lane.b32.xlu0 %v1172, 15
      %v1203 = vpop.permute.xlu0 %1202
      %1204 = vrot.lane.b32.xlu0 %v1173, 15
      %v1205 = vpop.permute.xlu0 %1204
      %1206 = vrot.lane.b32.xlu0 %v1174, 15
      %v1207 = vpop.permute.xlu0 %1206
      %1208 = vrot.lane.b32.xlu0 %v1175, 15
      %v1209 = vpop.permute.xlu0 %1208
      %1210 = vrot.lane.b32.xlu0 %v1176, 15
      %v1211 = vpop.permute.xlu0 %1210
      %1212 = vrot.lane.b32.xlu0 %v1177, 15
      %v1213 = vpop.permute.xlu0 %1212
      %vm1214 = vcmask 121856
      %v1215 = vsel %vm1214, %v1191, %v1193
      %v1216 = vsel %vm1214, %v1193, %v1195
      %v1217 = vsel %vm1214, %v1197, %v1199
      %v1218 = vsel %vm1214, %v1199, %v1201
      %v1219 = vsel %vm1214, %v1203, %v1205
      %v1220 = vsel %vm1214, %v1205, %v1207
      %v1221 = vsel %vm1214, %v1209, %v1211
      %v1222 = vsel %vm1214, %v1211, %v1213
      %v1231 = vadd.f32 %v1102, %v1215
      %v1232 = vadd.f32 %v1103, %v1216
      %v1233 = vadd.f32 %v1104, %v1217
      %v1234 = vadd.f32 %v1105, %v1218
      %v1235 = vadd.f32 %v1106, %v1219
      %v1236 = vadd.f32 %v1107, %v1220
      %v1237 = vadd.f32 %v1108, %v1221
      %v1238 = vadd.f32 %v1109, %v1222
      %1239 = vrot.lane.b32.xlu0 %v889, 127
      %v1240 = vpop.permute.xlu0 %1239
      %1241 = vrot.lane.b32.xlu0 %v893, 127
      %v1242 = vpop.permute.xlu0 %1241
      %vm1243 = vcmask 1039360
      %v1244 = vsel %vm1243, %v1240, %v1242
      %v1248 = vmul.f32 %v872, %v1240
      %v1249 = vmul.f32 %v873, %v1244
      %v1250 = vmul.f32 %v874, %v1242
      %v1251 = vmul.f32 %v875, %v1240
      %v1252 = vmul.f32 %v876, %v1244
      %v1253 = vmul.f32 %v877, %v1242
      %v1254 = vmul.f32 %v878, %v1240
      %v1255 = vmul.f32 %v879, %v1244
      %v1256 = vmul.f32 %v880, %v1242
      %v1257 = vmul.f32 %v881, %v1240
      %v1258 = vmul.f32 %v882, %v1244
      %v1259 = vmul.f32 %v883, %v1242
      %s1260 = scalar_lea.vmem %s4, 96
      %v1261 = vld [vmem:[%s1260] sm:$0xff]
      %v1262 = vld [vmem:[%s1260 + $0x8] sm:$0xff]
      %v1263 = vld [vmem:[%s1260 + $0x10] sm:$0xff]
      %v1264 = vld [vmem:[%s1260 + $0x18] sm:$0xff]
      %1266 = vset.pattern.permute.xlu0 0
      %1267 = vperm.xlu0 %1266, %v1261
      %v1268 = vpop.permute.xlu0 %1267
      %1271 = vset.pattern.permute.xlu0 0
      %1272 = vperm.xlu0 %1271, %v1262
      %v1273 = vpop.permute.xlu0 %1272
      %1276 = vset.pattern.permute.xlu0 0
      %1277 = vperm.xlu0 %1276, %v1263
      %v1278 = vpop.permute.xlu0 %1277
      %1281 = vset.pattern.permute.xlu0 0
      %1282 = vperm.xlu0 %1281, %v1264
      %v1283 = vpop.permute.xlu0 %1282
      %v1285 = vmul.f32 %v1268, %v1248
      %v1286 = vmul.f32 %v1268, %v1249
      %v1287 = vmul.f32 %v1268, %v1250
      %v1288 = vmul.f32 %v1273, %v1251
      %v1289 = vmul.f32 %v1273, %v1252
      %v1290 = vmul.f32 %v1273, %v1253
      %v1291 = vmul.f32 %v1278, %v1254
      %v1292 = vmul.f32 %v1278, %v1255
      %v1293 = vmul.f32 %v1278, %v1256
      %v1294 = vmul.f32 %v1283, %v1257
      %v1295 = vmul.f32 %v1283, %v1258
      %v1296 = vmul.f32 %v1283, %v1259
      %1309 = vrot.lane.b32.xlu0 %v1285, 1
      %v1310 = vpop.permute.xlu0 %1309
      %1311 = vrot.lane.b32.xlu0 %v1286, 1
      %v1312 = vpop.permute.xlu0 %1311
      %1313 = vrot.lane.b32.xlu0 %v1287, 1
      %v1314 = vpop.permute.xlu0 %1313
      %1315 = vrot.lane.b32.xlu0 %v1288, 1
      %v1316 = vpop.permute.xlu0 %1315
      %1317 = vrot.lane.b32.xlu0 %v1289, 1
      %v1318 = vpop.permute.xlu0 %1317
      %1319 = vrot.lane.b32.xlu0 %v1290, 1
      %v1320 = vpop.permute.xlu0 %1319
      %1321 = vrot.lane.b32.xlu0 %v1291, 1
      %v1322 = vpop.permute.xlu0 %1321
      %1323 = vrot.lane.b32.xlu0 %v1292, 1
      %v1324 = vpop.permute.xlu0 %1323
      %1325 = vrot.lane.b32.xlu0 %v1293, 1
      %v1326 = vpop.permute.xlu0 %1325
      %1327 = vrot.lane.b32.xlu0 %v1294, 1
      %v1328 = vpop.permute.xlu0 %1327
      %1329 = vrot.lane.b32.xlu0 %v1295, 1
      %v1330 = vpop.permute.xlu0 %1329
      %1331 = vrot.lane.b32.xlu0 %v1296, 1
      %v1332 = vpop.permute.xlu0 %1331
      %vm1333 = vcmask 7168
      %v1334 = vsel %vm1333, %v1310, %v1312
      %v1335 = vsel %vm1333, %v1312, %v1314
      %v1336 = vsel %vm1333, %v1316, %v1318
      %v1337 = vsel %vm1333, %v1318, %v1320
      %v1338 = vsel %vm1333, %v1322, %v1324
      %v1339 = vsel %vm1333, %v1324, %v1326
      %v1340 = vsel %vm1333, %v1328, %v1330
      %v1341 = vsel %vm1333, %v1330, %v1332
      %v1350 = vadd.f32 %v1231, %v1334
      %v1351 = vadd.f32 %v1232, %v1335
      %v1352 = vadd.f32 %v1233, %v1336
      %v1353 = vadd.f32 %v1234, %v1337
      %v1354 = vadd.f32 %v1235, %v1338
      %v1355 = vadd.f32 %v1236, %v1339
      %v1356 = vadd.f32 %v1237, %v1340
      %v1357 = vadd.f32 %v1238, %v1341
      %v1358 = vld [vmem:[#allocation2 + $0x8] sm:$0xff]
      %v1359 = vld [vmem:[#allocation2 + $0x10] sm:$0xff]
      %v1360 = vld [vmem:[#allocation2 + $0x18] sm:$0xff]
      %v1361 = vld [vmem:[#allocation2 + $0x28] sm:$0xff]
      %v1362 = vld [vmem:[#allocation2 + $0x30] sm:$0xff]
      %v1363 = vld [vmem:[#allocation2 + $0x38] sm:$0xff]
      %v1364 = vld [vmem:[#allocation2 + $0x48] sm:$0xff]
      %v1365 = vld [vmem:[#allocation2 + $0x50] sm:$0xff]
      %v1366 = vld [vmem:[#allocation2 + $0x58] sm:$0xff]
      %v1367 = vld [vmem:[#allocation2 + $0x68] sm:$0xff]
      %v1368 = vld [vmem:[#allocation2 + $0x70] sm:$0xff]
      %v1369 = vld [vmem:[#allocation2 + $0x78] sm:$0xff]
      %1370 = vrot.lane.b32.xlu0 %v1115, 1
      %v1371 = vpop.permute.xlu0 %1370
      %1372 = vrot.lane.b32.xlu0 %v1119, 1
      %v1373 = vpop.permute.xlu0 %1372
      %v1374 = vsel %vm1333, %v1371, %v1373
      %v1378 = vmul.f32 %v1358, %v1371
      %v1379 = vmul.f32 %v1359, %v1374
      %v1380 = vmul.f32 %v1360, %v1373
      %v1381 = vmul.f32 %v1361, %v1371
      %v1382 = vmul.f32 %v1362, %v1374
      %v1383 = vmul.f32 %v1363, %v1373
      %v1384 = vmul.f32 %v1364, %v1371
      %v1385 = vmul.f32 %v1365, %v1374
      %v1386 = vmul.f32 %v1366, %v1373
      %v1387 = vmul.f32 %v1367, %v1371
      %v1388 = vmul.f32 %v1368, %v1374
      %v1389 = vmul.f32 %v1369, %v1373
      %s1390 = scalar_lea.vmem %s4, 160
      %v1391 = vld [vmem:[%s1390] sm:$0xff]
      %v1392 = vld [vmem:[%s1390 + $0x8] sm:$0xff]
      %v1393 = vld [vmem:[%s1390 + $0x10] sm:$0xff]
      %v1394 = vld [vmem:[%s1390 + $0x18] sm:$0xff]
      %1396 = vset.pattern.permute.xlu0 0
      %1397 = vperm.xlu0 %1396, %v1391
      %v1398 = vpop.permute.xlu0 %1397
      %1401 = vset.pattern.permute.xlu0 0
      %1402 = vperm.xlu0 %1401, %v1392
      %v1403 = vpop.permute.xlu0 %1402
      %1406 = vset.pattern.permute.xlu0 0
      %1407 = vperm.xlu0 %1406, %v1393
      %v1408 = vpop.permute.xlu0 %1407
      %1411 = vset.pattern.permute.xlu0 0
      %1412 = vperm.xlu0 %1411, %v1394
      %v1413 = vpop.permute.xlu0 %1412
      %v1415 = vmul.f32 %v1398, %v1378
      %v1416 = vmul.f32 %v1398, %v1379
      %v1417 = vmul.f32 %v1398, %v1380
      %v1418 = vmul.f32 %v1403, %v1381
      %v1419 = vmul.f32 %v1403, %v1382
      %v1420 = vmul.f32 %v1403, %v1383
      %v1421 = vmul.f32 %v1408, %v1384
      %v1422 = vmul.f32 %v1408, %v1385
      %v1423 = vmul.f32 %v1408, %v1386
      %v1424 = vmul.f32 %v1413, %v1387
      %v1425 = vmul.f32 %v1413, %v1388
      %v1426 = vmul.f32 %v1413, %v1389
      %1439 = vrot.lane.b32.xlu0 %v1415, 127
      %v1440 = vpop.permute.xlu0 %1439
      %1441 = vrot.lane.b32.xlu0 %v1416, 127
      %v1442 = vpop.permute.xlu0 %1441
      %1443 = vrot.lane.b32.xlu0 %v1417, 127
      %v1444 = vpop.permute.xlu0 %1443
      %1445 = vrot.lane.b32.xlu0 %v1418, 127
      %v1446 = vpop.permute.xlu0 %1445
      %1447 = vrot.lane.b32.xlu0 %v1419, 127
      %v1448 = vpop.permute.xlu0 %1447
      %1449 = vrot.lane.b32.xlu0 %v1420, 127
      %v1450 = vpop.permute.xlu0 %1449
      %1451 = vrot.lane.b32.xlu0 %v1421, 127
      %v1452 = vpop.permute.xlu0 %1451
      %1453 = vrot.lane.b32.xlu0 %v1422, 127
      %v1454 = vpop.permute.xlu0 %1453
      %1455 = vrot.lane.b32.xlu0 %v1423, 127
      %v1456 = vpop.permute.xlu0 %1455
      %1457 = vrot.lane.b32.xlu0 %v1424, 127
      %v1458 = vpop.permute.xlu0 %1457
      %1459 = vrot.lane.b32.xlu0 %v1425, 127
      %v1460 = vpop.permute.xlu0 %1459
      %1461 = vrot.lane.b32.xlu0 %v1426, 127
      %v1462 = vpop.permute.xlu0 %1461
      %v1463 = vsel %vm1243, %v1440, %v1442
      %v1464 = vsel %vm1243, %v1442, %v1444
      %v1465 = vsel %vm1243, %v1446, %v1448
      %v1466 = vsel %vm1243, %v1448, %v1450
      %v1467 = vsel %vm1243, %v1452, %v1454
      %v1468 = vsel %vm1243, %v1454, %v1456
      %v1469 = vsel %vm1243, %v1458, %v1460
      %v1470 = vsel %vm1243, %v1460, %v1462
      %v1479 = vadd.f32 %v1350, %v1463
      %v1480 = vadd.f32 %v1351, %v1464
      %v1481 = vadd.f32 %v1352, %v1465
      %v1482 = vadd.f32 %v1353, %v1466
      %v1483 = vadd.f32 %v1354, %v1467
      %v1484 = vadd.f32 %v1355, %v1468
      %v1485 = vadd.f32 %v1356, %v1469
      %v1486 = vadd.f32 %v1357, %v1470
      %1487 = vrot.lane.b32.xlu0 %v889, 15
      %v1488 = vpop.permute.xlu0 %1487
      %1489 = vrot.lane.b32.xlu0 %v893, 15
      %v1490 = vpop.permute.xlu0 %1489
      %v1491 = vsel %vm1214, %v1488, %v1490
      %v1495 = vmul.f32 %v1358, %v1488
      %v1496 = vmul.f32 %v1359, %v1491
      %v1497 = vmul.f32 %v1360, %v1490
      %v1498 = vmul.f32 %v1361, %v1488
      %v1499 = vmul.f32 %v1362, %v1491
      %v1500 = vmul.f32 %v1363, %v1490
      %v1501 = vmul.f32 %v1364, %v1488
      %v1502 = vmul.f32 %v1365, %v1491
      %v1503 = vmul.f32 %v1366, %v1490
      %v1504 = vmul.f32 %v1367, %v1488
      %v1505 = vmul.f32 %v1368, %v1491
      %v1506 = vmul.f32 %v1369, %v1490
      %s1507 = scalar_lea.vmem %s4, 192
      %v1508 = vld [vmem:[%s1507] sm:$0xff]
      %v1509 = vld [vmem:[%s1507 + $0x8] sm:$0xff]
      %v1510 = vld [vmem:[%s1507 + $0x10] sm:$0xff]
      %v1511 = vld [vmem:[%s1507 + $0x18] sm:$0xff]
      %1513 = vset.pattern.permute.xlu0 0
      %1514 = vperm.xlu0 %1513, %v1508
      %v1515 = vpop.permute.xlu0 %1514
      %1518 = vset.pattern.permute.xlu0 0
      %1519 = vperm.xlu0 %1518, %v1509
      %v1520 = vpop.permute.xlu0 %1519
      %1523 = vset.pattern.permute.xlu0 0
      %1524 = vperm.xlu0 %1523, %v1510
      %v1525 = vpop.permute.xlu0 %1524
      %1528 = vset.pattern.permute.xlu0 0
      %1529 = vperm.xlu0 %1528, %v1511
      %v1530 = vpop.permute.xlu0 %1529
      %v1532 = vmul.f32 %v1515, %v1495
      %v1533 = vmul.f32 %v1515, %v1496
      %v1534 = vmul.f32 %v1515, %v1497
      %v1535 = vmul.f32 %v1520, %v1498
      %v1536 = vmul.f32 %v1520, %v1499
      %v1537 = vmul.f32 %v1520, %v1500
      %v1538 = vmul.f32 %v1525, %v1501
      %v1539 = vmul.f32 %v1525, %v1502
      %v1540 = vmul.f32 %v1525, %v1503
      %v1541 = vmul.f32 %v1530, %v1504
      %v1542 = vmul.f32 %v1530, %v1505
      %v1543 = vmul.f32 %v1530, %v1506
      %1556 = vrot.lane.b32.xlu0 %v1532, 113
      %v1557 = vpop.permute.xlu0 %1556
      %1558 = vrot.lane.b32.xlu0 %v1533, 113
      %v1559 = vpop.permute.xlu0 %1558
      %1560 = vrot.lane.b32.xlu0 %v1534, 113
      %v1561 = vpop.permute.xlu0 %1560
      %1562 = vrot.lane.b32.xlu0 %v1535, 113
      %v1563 = vpop.permute.xlu0 %1562
      %1564 = vrot.lane.b32.xlu0 %v1536, 113
      %v1565 = vpop.permute.xlu0 %1564
      %1566 = vrot.lane.b32.xlu0 %v1537, 113
      %v1567 = vpop.permute.xlu0 %1566
      %1568 = vrot.lane.b32.xlu0 %v1538, 113
      %v1569 = vpop.permute.xlu0 %1568
      %1570 = vrot.lane.b32.xlu0 %v1539, 113
      %v1571 = vpop.permute.xlu0 %1570
      %1572 = vrot.lane.b32.xlu0 %v1540, 113
      %v1573 = vpop.permute.xlu0 %1572
      %1574 = vrot.lane.b32.xlu0 %v1541, 113
      %v1575 = vpop.permute.xlu0 %1574
      %1576 = vrot.lane.b32.xlu0 %v1542, 113
      %v1577 = vpop.permute.xlu0 %1576
      %1578 = vrot.lane.b32.xlu0 %v1543, 113
      %v1579 = vpop.permute.xlu0 %1578
      %v1580 = vsel %vm1124, %v1557, %v1559
      %v1581 = vsel %vm1124, %v1559, %v1561
      %v1582 = vsel %vm1124, %v1563, %v1565
      %v1583 = vsel %vm1124, %v1565, %v1567
      %v1584 = vsel %vm1124, %v1569, %v1571
      %v1585 = vsel %vm1124, %v1571, %v1573
      %v1586 = vsel %vm1124, %v1575, %v1577
      %v1587 = vsel %vm1124, %v1577, %v1579
      %v1596 = vadd.f32 %v1479, %v1580
      %v1597 = vadd.f32 %v1480, %v1581
      %v1598 = vadd.f32 %v1481, %v1582
      %v1599 = vadd.f32 %v1482, %v1583
      %v1600 = vadd.f32 %v1483, %v1584
      %v1601 = vadd.f32 %v1484, %v1585
      %v1602 = vadd.f32 %v1485, %v1586
      %v1603 = vadd.f32 %v1486, %v1587
      %s1604 = scalar_lea.vmem %s4, 224
      %v1605 = vld [vmem:[%s1604] sm:$0xff]
      %v1606 = vld [vmem:[%s1604 + $0x8] sm:$0xff]
      %v1607 = vld [vmem:[%s1604 + $0x10] sm:$0xff]
      %v1608 = vld [vmem:[%s1604 + $0x18] sm:$0xff]
      %1610 = vset.pattern.permute.xlu0 0
      %1611 = vperm.xlu0 %1610, %v1605
      %v1612 = vpop.permute.xlu0 %1611
      %1615 = vset.pattern.permute.xlu0 0
      %1616 = vperm.xlu0 %1615, %v1606
      %v1617 = vpop.permute.xlu0 %1616
      %1620 = vset.pattern.permute.xlu0 0
      %1621 = vperm.xlu0 %1620, %v1607
      %v1622 = vpop.permute.xlu0 %1621
      %1625 = vset.pattern.permute.xlu0 0
      %1626 = vperm.xlu0 %1625, %v1608
      %v1627 = vpop.permute.xlu0 %1626
      %v1629 = vmul.f32 %v1612, %v1358
      %v1630 = vmul.f32 %v1612, %v1359
      %v1631 = vmul.f32 %v1612, %v1360
      %v1632 = vmul.f32 %v1617, %v1361
      %v1633 = vmul.f32 %v1617, %v1362
      %v1634 = vmul.f32 %v1617, %v1363
      %v1635 = vmul.f32 %v1622, %v1364
      %v1636 = vmul.f32 %v1622, %v1365
      %v1637 = vmul.f32 %v1622, %v1366
      %v1638 = vmul.f32 %v1627, %v1367
      %v1639 = vmul.f32 %v1627, %v1368
      %v1640 = vmul.f32 %v1627, %v1369
      %1653 = vrot.lane.b32.xlu0 %v1629, 112
      %v1654 = vpop.permute.xlu0 %1653
      %1655 = vrot.lane.b32.xlu0 %v1630, 112
      %v1656 = vpop.permute.xlu0 %1655
      %1657 = vrot.lane.b32.xlu0 %v1631, 112
      %v1658 = vpop.permute.xlu0 %1657
      %1659 = vrot.lane.b32.xlu0 %v1632, 112
      %v1660 = vpop.permute.xlu0 %1659
      %1661 = vrot.lane.b32.xlu0 %v1633, 112
      %v1662 = vpop.permute.xlu0 %1661
      %1663 = vrot.lane.b32.xlu0 %v1634, 112
      %v1664 = vpop.permute.xlu0 %1663
      %1665 = vrot.lane.b32.xlu0 %v1635, 112
      %v1666 = vpop.permute.xlu0 %1665
      %1667 = vrot.lane.b32.xlu0 %v1636, 112
      %v1668 = vpop.permute.xlu0 %1667
      %1669 = vrot.lane.b32.xlu0 %v1637, 112
      %v1670 = vpop.permute.xlu0 %1669
      %1671 = vrot.lane.b32.xlu0 %v1638, 112
      %v1672 = vpop.permute.xlu0 %1671
      %1673 = vrot.lane.b32.xlu0 %v1639, 112
      %v1674 = vpop.permute.xlu0 %1673
      %1675 = vrot.lane.b32.xlu0 %v1640, 112
      %v1676 = vpop.permute.xlu0 %1675
      %vm1677 = vcmask 916480
      %v1678 = vsel %vm1677, %v1654, %v1656
      %v1679 = vsel %vm1677, %v1656, %v1658
      %v1680 = vsel %vm1677, %v1660, %v1662
      %v1681 = vsel %vm1677, %v1662, %v1664
      %v1682 = vsel %vm1677, %v1666, %v1668
      %v1683 = vsel %vm1677, %v1668, %v1670
      %v1684 = vsel %vm1677, %v1672, %v1674
      %v1685 = vsel %vm1677, %v1674, %v1676
      %v1694 = vadd.f32 %v1596, %v1678
      %v1695 = vadd.f32 %v1597, %v1679
      %v1696 = vadd.f32 %v1598, %v1680
      %v1697 = vadd.f32 %v1599, %v1681
      %v1698 = vadd.f32 %v1600, %v1682
      %v1699 = vadd.f32 %v1601, %v1683
      %v1700 = vadd.f32 %v1602, %v1684
      %v1701 = vadd.f32 %v1603, %v1685
      %1702 = vrot.lane.b32.xlu0 %v1115, 17
      %v1703 = vpop.permute.xlu0 %1702
      %1704 = vrot.lane.b32.xlu0 %v1119, 17
      %v1705 = vpop.permute.xlu0 %1704
      %v1706 = vsel %vm987, %v1703, %v1705
      %v1710 = vmul.f32 %v1358, %v1703
      %v1711 = vmul.f32 %v1359, %v1706
      %v1712 = vmul.f32 %v1360, %v1705
      %v1713 = vmul.f32 %v1361, %v1703
      %v1714 = vmul.f32 %v1362, %v1706
      %v1715 = vmul.f32 %v1363, %v1705
      %v1716 = vmul.f32 %v1364, %v1703
      %v1717 = vmul.f32 %v1365, %v1706
      %v1718 = vmul.f32 %v1366, %v1705
      %v1719 = vmul.f32 %v1367, %v1703
      %v1720 = vmul.f32 %v1368, %v1706
      %v1721 = vmul.f32 %v1369, %v1705
      %s1722 = scalar_lea.vmem %s4, 256
      %v1723 = vld [vmem:[%s1722] sm:$0xff]
      %v1724 = vld [vmem:[%s1722 + $0x8] sm:$0xff]
      %v1725 = vld [vmem:[%s1722 + $0x10] sm:$0xff]
      %v1726 = vld [vmem:[%s1722 + $0x18] sm:$0xff]
      %1728 = vset.pattern.permute.xlu0 0
      %1729 = vperm.xlu0 %1728, %v1723
      %v1730 = vpop.permute.xlu0 %1729
      %1733 = vset.pattern.permute.xlu0 0
      %1734 = vperm.xlu0 %1733, %v1724
      %v1735 = vpop.permute.xlu0 %1734
      %1738 = vset.pattern.permute.xlu0 0
      %1739 = vperm.xlu0 %1738, %v1725
      %v1740 = vpop.permute.xlu0 %1739
      %1743 = vset.pattern.permute.xlu0 0
      %1744 = vperm.xlu0 %1743, %v1726
      %v1745 = vpop.permute.xlu0 %1744
      %v1747 = vmul.f32 %v1730, %v1710
      %v1748 = vmul.f32 %v1730, %v1711
      %v1749 = vmul.f32 %v1730, %v1712
      %v1750 = vmul.f32 %v1735, %v1713
      %v1751 = vmul.f32 %v1735, %v1714
      %v1752 = vmul.f32 %v1735, %v1715
      %v1753 = vmul.f32 %v1740, %v1716
      %v1754 = vmul.f32 %v1740, %v1717
      %v1755 = vmul.f32 %v1740, %v1718
      %v1756 = vmul.f32 %v1745, %v1719
      %v1757 = vmul.f32 %v1745, %v1720
      %v1758 = vmul.f32 %v1745, %v1721
      %1771 = vrot.lane.b32.xlu0 %v1747, 111
      %v1772 = vpop.permute.xlu0 %1771
      %1773 = vrot.lane.b32.xlu0 %v1748, 111
      %v1774 = vpop.permute.xlu0 %1773
      %1775 = vrot.lane.b32.xlu0 %v1749, 111
      %v1776 = vpop.permute.xlu0 %1775
      %1777 = vrot.lane.b32.xlu0 %v1750, 111
      %v1778 = vpop.permute.xlu0 %1777
      %1779 = vrot.lane.b32.xlu0 %v1751, 111
      %v1780 = vpop.permute.xlu0 %1779
      %1781 = vrot.lane.b32.xlu0 %v1752, 111
      %v1782 = vpop.permute.xlu0 %1781
      %1783 = vrot.lane.b32.xlu0 %v1753, 111
      %v1784 = vpop.permute.xlu0 %1783
      %1785 = vrot.lane.b32.xlu0 %v1754, 111
      %v1786 = vpop.permute.xlu0 %1785
      %1787 = vrot.lane.b32.xlu0 %v1755, 111
      %v1788 = vpop.permute.xlu0 %1787
      %1789 = vrot.lane.b32.xlu0 %v1756, 111
      %v1790 = vpop.permute.xlu0 %1789
      %1791 = vrot.lane.b32.xlu0 %v1757, 111
      %v1792 = vpop.permute.xlu0 %1791
      %1793 = vrot.lane.b32.xlu0 %v1758, 111
      %v1794 = vpop.permute.xlu0 %1793
      %v1795 = vsel %vm898, %v1772, %v1774
      %v1796 = vsel %vm898, %v1774, %v1776
      %v1797 = vsel %vm898, %v1778, %v1780
      %v1798 = vsel %vm898, %v1780, %v1782
      %v1799 = vsel %vm898, %v1784, %v1786
      %v1800 = vsel %vm898, %v1786, %v1788
      %v1801 = vsel %vm898, %v1790, %v1792
      %v1802 = vsel %vm898, %v1792, %v1794
      %v1811 = vadd.f32 %v1694, %v1795
      %v1812 = vadd.f32 %v1695, %v1796
      %v1813 = vadd.f32 %v1696, %v1797
      %v1814 = vadd.f32 %v1697, %v1798
      %v1815 = vadd.f32 %v1698, %v1799
      %v1816 = vadd.f32 %v1699, %v1800
      %v1817 = vadd.f32 %v1700, %v1801
      %v1818 = vadd.f32 %v1701, %v1802
      %v1819 = vld [vmem:[%s5] sm:$0xff]
      %v1820 = vld [vmem:[%s5 + $0x8] sm:$0xff]
      %v1821 = vld [vmem:[%s5 + $0x10] sm:$0xff]
      %v1822 = vld [vmem:[%s5 + $0x18] sm:$0xff]
      %1824 = vset.pattern.permute.xlu0 0
      %1825 = vperm.xlu0 %1824, %v1819
      %v1826 = vpop.permute.xlu0 %1825
      %1829 = vset.pattern.permute.xlu0 0
      %1830 = vperm.xlu0 %1829, %v1820
      %v1831 = vpop.permute.xlu0 %1830
      %1834 = vset.pattern.permute.xlu0 0
      %1835 = vperm.xlu0 %1834, %v1821
      %v1836 = vpop.permute.xlu0 %1835
      %1839 = vset.pattern.permute.xlu0 0
      %1840 = vperm.xlu0 %1839, %v1822
      %v1841 = vpop.permute.xlu0 %1840
      %v1843 = vmul.f32 %v1811, %v1826
      %v1844 = vmul.f32 %v1812, %v1826
      %v1845 = vmul.f32 %v1813, %v1831
      %v1846 = vmul.f32 %v1814, %v1831
      %v1847 = vmul.f32 %v1815, %v1836
      %v1848 = vmul.f32 %v1816, %v1836
      %v1849 = vmul.f32 %v1817, %v1841
      %v1850 = vmul.f32 %v1818, %v1841
      %v1851 = vld [vmem:[%s6] sm:$0xff]
      %v1852 = vld [vmem:[%s6 + $0x8] sm:$0xff]
      %v1853 = vld [vmem:[%s6 + $0x10] sm:$0xff]
      %v1854 = vld [vmem:[%s6 + $0x18] sm:$0xff]
      %1856 = vset.pattern.permute.xlu0 0
      %1857 = vperm.xlu0 %1856, %v1851
      %v1858 = vpop.permute.xlu0 %1857
      %1861 = vset.pattern.permute.xlu0 0
      %1862 = vperm.xlu0 %1861, %v1852
      %v1863 = vpop.permute.xlu0 %1862
      %1866 = vset.pattern.permute.xlu0 0
      %1867 = vperm.xlu0 %1866, %v1853
      %v1868 = vpop.permute.xlu0 %1867
      %1871 = vset.pattern.permute.xlu0 0
      %1872 = vperm.xlu0 %1871, %v1854
      %v1873 = vpop.permute.xlu0 %1872
      %v1875 = vadd.f32 %v1843, %v1858
      %v1876 = vadd.f32 %v1844, %v1858
      %v1877 = vadd.f32 %v1845, %v1863
      %v1878 = vadd.f32 %v1846, %v1863
      %v1879 = vadd.f32 %v1847, %v1868
      %v1880 = vadd.f32 %v1848, %v1868
      %v1881 = vadd.f32 %v1849, %v1873
      %v1882 = vadd.f32 %v1850, %v1873
      %v1883 = vmul.f32 %v1875, 0.5
      %v1884 = vmul.f32 %v1876, 0.5
      %v1885 = vmul.f32 %v1877, 0.5
      %v1886 = vmul.f32 %v1878, 0.5
      %v1887 = vmul.f32 %v1879, 0.5
      %v1888 = vmul.f32 %v1880, 0.5
      %v1889 = vmul.f32 %v1881, 0.5
      %v1890 = vmul.f32 %v1882, 0.5
      %v1891 = vmul.f32 %v1875, 0.70710677
      %v1892 = vmul.f32 %v1876, 0.70710677
      %v1893 = vmul.f32 %v1877, 0.70710677
      %v1894 = vmul.f32 %v1878, 0.70710677
      %v1895 = vmul.f32 %v1879, 0.70710677
      %v1896 = vmul.f32 %v1880, 0.70710677
      %v1897 = vmul.f32 %v1881, 0.70710677
      %v1898 = vmul.f32 %v1882, 0.70710677
      %v1899 = vmax.f32 %v1891, -4.0
      %v1900 = vmax.f32 %v1892, -4.0
      %v1901 = vmax.f32 %v1893, -4.0
      %v1902 = vmax.f32 %v1894, -4.0
      %v1903 = vmax.f32 %v1895, -4.0
      %v1904 = vmax.f32 %v1896, -4.0
      %v1905 = vmax.f32 %v1897, -4.0
      %v1906 = vmax.f32 %v1898, -4.0
      %v1907 = vmin.f32 %v1899, 4.0
      %v1908 = vmin.f32 %v1900, 4.0
      %v1909 = vmin.f32 %v1901, 4.0
      %v1910 = vmin.f32 %v1902, 4.0
      %v1911 = vmin.f32 %v1903, 4.0
      %v1912 = vmin.f32 %v1904, 4.0
      %v1913 = vmin.f32 %v1905, 4.0
      %v1914 = vmin.f32 %v1906, 4.0
      %v1915 = vmul.f32 %v1907, %v1907
      %v1916 = vmul.f32 %v1908, %v1908
      %v1917 = vmul.f32 %v1909, %v1909
      %v1918 = vmul.f32 %v1910, %v1910
      %v1919 = vmul.f32 %v1911, %v1911
      %v1920 = vmul.f32 %v1912, %v1912
      %v1921 = vmul.f32 %v1913, %v1913
      %v1922 = vmul.f32 %v1914, %v1914
      %v1923 = vmul.f32 %v1915, -2.7261424e-10
      %v1924 = vmul.f32 %v1916, -2.7261424e-10
      %v1925 = vmul.f32 %v1917, -2.7261424e-10
      %v1926 = vmul.f32 %v1918, -2.7261424e-10
      %v1927 = vmul.f32 %v1919, -2.7261424e-10
      %v1928 = vmul.f32 %v1920, -2.7261424e-10
      %v1929 = vmul.f32 %v1921, -2.7261424e-10
      %v1930 = vmul.f32 %v1922, -2.7261424e-10
      %v1931 = vadd.f32 %v1923, 2.7706815e-08
      %v1932 = vadd.f32 %v1924, 2.7706815e-08
      %v1933 = vadd.f32 %v1925, 2.7706815e-08
      %v1934 = vadd.f32 %v1926, 2.7706815e-08
      %v1935 = vadd.f32 %v1927, 2.7706815e-08
      %v1936 = vadd.f32 %v1928, 2.7706815e-08
      %v1937 = vadd.f32 %v1929, 2.7706815e-08
      %v1938 = vadd.f32 %v1930, 2.7706815e-08
      %v1939 = vmul.f32 %v1931, %v1915
      %v1940 = vmul.f32 %v1932, %v1916
      %v1941 = vmul.f32 %v1933, %v1917
      %v1942 = vmul.f32 %v1934, %v1918
      %v1943 = vmul.f32 %v1935, %v1919
      %v1944 = vmul.f32 %v1936, %v1920
      %v1945 = vmul.f32 %v1937, %v1921
      %v1946 = vmul.f32 %v1938, %v1922
      %v1947 = vadd.f32 %v1939, -2.101024e-06
      %v1948 = vadd.f32 %v1940, -2.101024e-06
      %v1949 = vadd.f32 %v1941, -2.101024e-06
      %v1950 = vadd.f32 %v1942, -2.101024e-06
      %v1951 = vadd.f32 %v1943, -2.101024e-06
      %v1952 = vadd.f32 %v1944, -2.101024e-06
      %v1953 = vadd.f32 %v1945, -2.101024e-06
      %v1954 = vadd.f32 %v1946, -2.101024e-06
      %v1955 = vmul.f32 %v1947, %v1915
      %v1956 = vmul.f32 %v1948, %v1916
      %v1957 = vmul.f32 %v1949, %v1917
      %v1958 = vmul.f32 %v1950, %v1918
      %v1959 = vmul.f32 %v1951, %v1919
      %v1960 = vmul.f32 %v1952, %v1920
      %v1961 = vmul.f32 %v1953, %v1921
      %v1962 = vmul.f32 %v1954, %v1922
      %v1963 = vadd.f32 %v1955, -5.6925062e-05
      %v1964 = vadd.f32 %v1956, -5.6925062e-05
      %v1965 = vadd.f32 %v1957, -5.6925062e-05
      %v1966 = vadd.f32 %v1958, -5.6925062e-05
      %v1967 = vadd.f32 %v1959, -5.6925062e-05
      %v1968 = vadd.f32 %v1960, -5.6925062e-05
      %v1969 = vadd.f32 %v1961, -5.6925062e-05
      %v1970 = vadd.f32 %v1962, -5.6925062e-05
      %v1971 = vmul.f32 %v1963, %v1915
      %v1972 = vmul.f32 %v1964, %v1916
      %v1973 = vmul.f32 %v1965, %v1917
      %v1974 = vmul.f32 %v1966, %v1918
      %v1975 = vmul.f32 %v1967, %v1919
      %v1976 = vmul.f32 %v1968, %v1920
      %v1977 = vmul.f32 %v1969, %v1921
      %v1978 = vmul.f32 %v1970, %v1922
      %v1979 = vadd.f32 %v1971, -0.00073499064
      %v1980 = vadd.f32 %v1972, -0.00073499064
      %v1981 = vadd.f32 %v1973, -0.00073499064
      %v1982 = vadd.f32 %v1974, -0.00073499064
      %v1983 = vadd.f32 %v1975, -0.00073499064
      %v1984 = vadd.f32 %v1976, -0.00073499064
      %v1985 = vadd.f32 %v1977, -0.00073499064
      %v1986 = vadd.f32 %v1978, -0.00073499064
      %v1987 = vmul.f32 %v1979, %v1915
      %v1988 = vmul.f32 %v1980, %v1916
      %v1989 = vmul.f32 %v1981, %v1917
      %v1990 = vmul.f32 %v1982, %v1918
      %v1991 = vmul.f32 %v1983, %v1919
      %v1992 = vmul.f32 %v1984, %v1920
      %v1993 = vmul.f32 %v1985, %v1921
      %v1994 = vmul.f32 %v1986, %v1922
      %v1995 = vadd.f32 %v1987, -0.0029546
      %v1996 = vadd.f32 %v1988, -0.0029546
      %v1997 = vadd.f32 %v1989, -0.0029546
      %v1998 = vadd.f32 %v1990, -0.0029546
      %v1999 = vadd.f32 %v1991, -0.0029546
      %v2000 = vadd.f32 %v1992, -0.0029546
      %v2001 = vadd.f32 %v1993, -0.0029546
      %v2002 = vadd.f32 %v1994, -0.0029546
      %v2003 = vmul.f32 %v1995, %v1915
      %v2004 = vmul.f32 %v1996, %v1916
      %v2005 = vmul.f32 %v1997, %v1917
      %v2006 = vmul.f32 %v1998, %v1918
      %v2007 = vmul.f32 %v1999, %v1919
      %v2008 = vmul.f32 %v2000, %v1920
      %v2009 = vmul.f32 %v2001, %v1921
      %v2010 = vmul.f32 %v2002, %v1922
      %v2011 = vadd.f32 %v2003, -0.016096033
      %v2012 = vadd.f32 %v2004, -0.016096033
      %v2013 = vadd.f32 %v2005, -0.016096033
      %v2014 = vadd.f32 %v2006, -0.016096033
      %v2015 = vadd.f32 %v2007, -0.016096033
      %v2016 = vadd.f32 %v2008, -0.016096033
      %v2017 = vadd.f32 %v2009, -0.016096033
      %v2018 = vadd.f32 %v2010, -0.016096033
      %v2019 = vmul.f32 %v1915, -1.45660715e-05
      %v2020 = vmul.f32 %v1916, -1.45660715e-05
      %v2021 = vmul.f32 %v1917, -1.45660715e-05
      %v2022 = vmul.f32 %v1918, -1.45660715e-05
      %v2023 = vmul.f32 %v1919, -1.45660715e-05
      %v2024 = vmul.f32 %v1920, -1.45660715e-05
      %v2025 = vmul.f32 %v1921, -1.45660715e-05
      %v2026 = vmul.f32 %v1922, -1.45660715e-05
      %v2027 = vadd.f32 %v2019, -0.00021337405
      %v2028 = vadd.f32 %v2020, -0.00021337405
      %v2029 = vadd.f32 %v2021, -0.00021337405
      %v2030 = vadd.f32 %v2022, -0.00021337405
      %v2031 = vadd.f32 %v2023, -0.00021337405
      %v2032 = vadd.f32 %v2024, -0.00021337405
      %v2033 = vadd.f32 %v2025, -0.00021337405
      %v2034 = vadd.f32 %v2026, -0.00021337405
      %v2035 = vmul.f32 %v2027, %v1915
      %v2036 = vmul.f32 %v2028, %v1916
      %v2037 = vmul.f32 %v2029, %v1917
      %v2038 = vmul.f32 %v2030, %v1918
      %v2039 = vmul.f32 %v2031, %v1919
      %v2040 = vmul.f32 %v2032, %v1920
      %v2041 = vmul.f32 %v2033, %v1921
      %v2042 = vmul.f32 %v2034, %v1922
      %v2043 = vadd.f32 %v2035, -0.001682827
      %v2044 = vadd.f32 %v2036, -0.001682827
      %v2045 = vadd.f32 %v2037, -0.001682827
      %v2046 = vadd.f32 %v2038, -0.001682827
      %v2047 = vadd.f32 %v2039, -0.001682827
      %v2048 = vadd.f32 %v2040, -0.001682827
      %v2049 = vadd.f32 %v2041, -0.001682827
      %v2050 = vadd.f32 %v2042, -0.001682827
      %v2051 = vmul.f32 %v2043, %v1915
      %v2052 = vmul.f32 %v2044, %v1916
      %v2053 = vmul.f32 %v2045, %v1917
      %v2054 = vmul.f32 %v2046, %v1918
      %v2055 = vmul.f32 %v2047, %v1919
      %v2056 = vmul.f32 %v2048, %v1920
      %v2057 = vmul.f32 %v2049, %v1921
      %v2058 = vmul.f32 %v2050, %v1922
      %v2059 = vadd.f32 %v2051, -0.0073733293
      %v2060 = vadd.f32 %v2052, -0.0073733293
      %v2061 = vadd.f32 %v2053, -0.0073733293
      %v2062 = vadd.f32 %v2054, -0.0073733293
      %v2063 = vadd.f32 %v2055, -0.0073733293
      %v2064 = vadd.f32 %v2056, -0.0073733293
      %v2065 = vadd.f32 %v2057, -0.0073733293
      %v2066 = vadd.f32 %v2058, -0.0073733293
      %v2067 = vmul.f32 %v2059, %v1915
      %v2068 = vmul.f32 %v2060, %v1916
      %v2069 = vmul.f32 %v2061, %v1917
      %v2070 = vmul.f32 %v2062, %v1918
      %v2071 = vmul.f32 %v2063, %v1919
      %v2072 = vmul.f32 %v2064, %v1920
      %v2073 = vmul.f32 %v2065, %v1921
      %v2074 = vmul.f32 %v2066, %v1922
      %v2075 = vadd.f32 %v2067, -0.014264739
      %v2076 = vadd.f32 %v2068, -0.014264739
      %v2077 = vadd.f32 %v2069, -0.014264739
      %v2078 = vadd.f32 %v2070, -0.014264739
      %v2079 = vadd.f32 %v2071, -0.014264739
      %v2080 = vadd.f32 %v2072, -0.014264739
      %v2081 = vadd.f32 %v2073, -0.014264739
      %v2082 = vadd.f32 %v2074, -0.014264739
      %v2083 = vmul.f32 %v1907, %v2011
      %v2084 = vmul.f32 %v1908, %v2012
      %v2085 = vmul.f32 %v1909, %v2013
      %v2086 = vmul.f32 %v1910, %v2014
      %v2087 = vmul.f32 %v1911, %v2015
      %v2088 = vmul.f32 %v1912, %v2016
      %v2089 = vmul.f32 %v1913, %v2017
      %v2090 = vmul.f32 %v1914, %v2018
      %v2091 = vrcp.pop %v2075
      %v2092 = vrcp.pop %v2076
      %v2093 = vrcp.pop %v2077
      %v2094 = vrcp.pop %v2078
      %v2095 = vrcp.pop %v2079
      %v2096 = vrcp.pop %v2080
      %v2097 = vrcp.pop %v2081
      %v2098 = vrcp.pop %v2082
      %v2099 = vmul.f32 %v2083, %v2091
      %v2100 = vmul.f32 %v2084, %v2092
      %v2101 = vmul.f32 %v2085, %v2093
      %v2102 = vmul.f32 %v2086, %v2094
      %v2103 = vmul.f32 %v2087, %v2095
      %v2104 = vmul.f32 %v2088, %v2096
      %v2105 = vmul.f32 %v2089, %v2097
      %v2106 = vmul.f32 %v2090, %v2098
      %v2107 = vadd.f32 %v2099, 1.0
      %v2108 = vadd.f32 %v2100, 1.0
      %v2109 = vadd.f32 %v2101, 1.0
      %v2110 = vadd.f32 %v2102, 1.0
      %v2111 = vadd.f32 %v2103, 1.0
      %v2112 = vadd.f32 %v2104, 1.0
      %v2113 = vadd.f32 %v2105, 1.0
      %v2114 = vadd.f32 %v2106, 1.0
      %v2115 = vmul.f32 %v1883, %v2107
      %v2116 = vmul.f32 %v1884, %v2108
      %v2117 = vmul.f32 %v1885, %v2109
      %v2118 = vmul.f32 %v1886, %v2110
      %v2119 = vmul.f32 %v1887, %v2111
      %v2120 = vmul.f32 %v1888, %v2112
      %v2121 = vmul.f32 %v1889, %v2113
      %v2122 = vmul.f32 %v1890, %v2114
      %v2123 = vld [vmem:[%s7] sm:$0xff]
      %v2124 = vpack.c.bf16 %v2123, %v2123
      %v2125 = vpack.c.bf16 %v2117, %v2115
      %v2126 = vpack.c.bf16 %v2118, %v2116
      %v2127 = vpack.c.bf16 %v2121, %v2119
      %v2128 = vpack.c.bf16 %v2122, %v2120
      %vm2129 = vcmask 261120
      %v2131 = vsel %vm2129, %v2124, 0
      %2133 = vmatprep.subr.bf16.mxu0 0
      %2134 = vmatpush1.bf16.msra.mxu0 0
      %2135 = vmatprep.subr.bf16.mxu0 0
      %2136 = vmatpush1.bf16.msra.mxu0 0
      %2137 = vmatprep.subr.bf16.mxu0 0
      %2138 = vmatpush1.bf16.msra.mxu0 0
      %2139 = vmatprep.subr.bf16.mxu0 0
      %2140 = vmatpush1.bf16.msra.mxu0 0
      %2141 = vmatprep.subr.bf16.mxu0 0
      %2142 = vmatpush1.bf16.msra.mxu0 0
      %2143 = vmatprep.subr.bf16.mxu0 0
      %2144 = vmatpush1.bf16.msra.mxu0 0
      %2145 = vmatprep.subr.bf16.mxu0 %v2128
      %2146 = vmatpush1.bf16.msra.mxu0 %v2127
      %2147 = vmatprep.subr.bf16.mxu0 %v2126
      %2148 = vmatpush1.bf16.msra.mxu0 %v2125
      %2149 = vmatprep.subr.bf16.mxu0 0
      %2150 = vmatpush2.bf16.msra.mxu0 0
      %2151 = vmatprep.subr.bf16.mxu0 0
      %2152 = vmatpush2.bf16.msra.mxu0 0
      %2153 = vmatprep.subr.bf16.mxu0 0
      %2154 = vmatpush2.bf16.msra.mxu0 0
      %2155 = vmatprep.subr.bf16.mxu0 0
      %2156 = vmatpush2.bf16.msra.mxu0 0
      %2157 = vmatprep.subr.bf16.mxu0 0
      %2158 = vmatpush2.bf16.msra.mxu0 0
      %2159 = vmatprep.subr.bf16.mxu0 0
      %2160 = vmatpush2.bf16.msra.mxu0 0
      %2161 = vmatprep.subr.bf16.mxu0 0
      %2162 = vmatpush2.bf16.msra.mxu0 0
      %2163 = vmatprep.subr.bf16.mxu0 0
      %2164 = vmatpush2.bf16.msra.mxu0 0
      %2165 = vmatprep.mubr.bf16.mxu0 0
      %2166 = vmatmul.mubr.bf16.gmra.mxu0 %v2131
      %v2167 = vpop.f32.mrf.mxu0
      %v2168 = vadd.f32 0.0, %v2167
      %v2169 = vpop.f32.mrf.mxu0
      %v2170 = vadd.f32 0.0, %v2169
      %v2171 = vpop.f32.mrf.mxu0
      %v2172 = vpop.f32.mrf.mxu0
      %2173 = vdwg.mxu0
      %v2174 = vld [vmem:[%s8] sm:$0xff]
      %2176 = vset.pattern.permute.xlu0 0
      %2177 = vperm.xlu0 %2176, %v2174
      %v2178 = vpop.permute.xlu0 %2177
      %v2180 = vmul.f32 %v2168, %v2178
      %v2181 = vmul.f32 %v2170, %v2178
      %v2182 = vld [vmem:[%s9] sm:$0xff]
      %2184 = vset.pattern.permute.xlu0 0
      %2185 = vperm.xlu0 %2184, %v2182
      %v2186 = vpop.permute.xlu0 %2185
      %v2188 = vadd.f32 %v2180, %v2186
      %v2189 = vadd.f32 %v2181, %v2186
      %v2190 = vld [vmem:[%s10] sm:$0xff]
      %2192 = vset.pattern.permute.xlu0 0
      %2193 = vperm.xlu0 %2192, %v2190
      %v2194 = vpop.permute.xlu0 %2193
      %v2196 = vmul.f32 %v2194, %v2188
      %v2197 = vmul.f32 %v2194, %v2189
      %v2198 = vadd.f32 %v442, %v2196
      %v2199 = vadd.f32 %v443, %v2197
      %2200 = vst [vmem:[%s440] sm:$0xff] %v2198
      %2201 = vst [vmem:[%s440 + $0x8] sm:$0xff] %v2199
      %p2202 = scmp.lt.s32.totalorder %s24, 1
      %s2203 = scalar_select %p2202, %s24, 1
      %s2204 = smul.addr %s2203, 2
      %s2205 = smul.addr %s2204, 8
      %s2206 = scalar_lea.vmem %s13, %s2205
      // Predicated region
      $region73: #{ffn_forward.1} parent=71 // pred_check
        %p2207 = pneg %p320
      $region74: #{ffn_forward.1} parent=71 // pred_check_branch
        %2209 = sbr.rel (%p2207) target = $region76
      $region75: #{ffn_forward.1} parent=71 // pred_region
        _
      $region76: #{ffn_forward.1} parent=71 // pred_fallthru
        _
    $region72: #{ffn_forward.1} parent=5 // pred_fallthru
      _
    %p2210 = scmp.le.s32.totalorder 2, %s19
    // Predicated region
    $region77: #{ffn_forward.1} parent=5 // pred_check
      %p2211 = pneg %p2210
    $region78: #{ffn_forward.1} parent=5 // pred_check_branch
      %2213 = sbr.rel (%p2211) target = $region80
    $region79: #{ffn_forward.1} parent=5 // pred_region
      %s2214 = ssub.s32 %s19, 2
      // Predicated region
      $region81: #{ffn_forward.1} parent=79 // pred_check
        %p2215 = pneg %p326
      $region82: #{ffn_forward.1} parent=79 // pred_check_branch
        %2217 = sbr.rel (%p2215) target = $region84
      $region83: #{ffn_forward.1} parent=79 // pred_region
        %p2218 = scmp.lt.s32.totalorder %s25, 1
        %s2219 = scalar_select %p2218, %s25, 1
        %s2220 = smul.addr %s2219, 2
        %s2221 = smul.addr %s2220, 8
        %s2222 = scalar_lea.vmem %s13, %s2221
      $region84: #{ffn_forward.1} parent=79 // pred_fallthru
        _
    $region80: #{ffn_forward.1} parent=5 // pred_fallthru
      _
  $region6: #{ffn_forward.1} parent=0 // loop_footer
    %s23 = sadd.s32 1, %s19
  $region7: #{ffn_forward.1} parent=0 // loop_footer_branch
    %18 = sbr.rel target = $region3
  $region8: #{ffn_forward.1} parent=0 // loop_exit
    _

</llo_original>
